<compile_context>
chip_gen: v7x
topology: tpu7x:2x2x1
jax: 0.10.0
libtpu: 0.0.40
codegen_flags: <defaults>
</compile_context>

<pallas_src>
import functools

import jax
import jax.numpy as jnp
from jax.experimental import pallas as pl
from jax.experimental.pallas import tpu as pltpu


# ----------------------------------------------------------------------------
# Kernel helpers
# ----------------------------------------------------------------------------
def _gate_update(gates, c, H):
    """PyTorch LSTM gate order (i, f, g, o). Full-width EUP passes, static lane slices."""
    sg = jax.nn.sigmoid(gates)          # (B, 4H) — one full-vreg sigmoid pass
    th = jnp.tanh(gates)                # (B, 4H) — one full-vreg tanh pass
    i = sg[:, 0 * H:1 * H]
    f = sg[:, 1 * H:2 * H]
    g = th[:, 2 * H:3 * H]
    o = sg[:, 3 * H:4 * H]
    c_new = f * c + i * g
    h_new = o * jnp.tanh(c_new)
    return h_new, c_new


def _recurrence(x_ref, wih0_ref, whh0_ref, b0_ref, w1_ref, b1_ref, out_ref, xp_ref):
    """Run the 2-layer LSTM over all timesteps. Returns final (h0, c0, h1, c1)."""
    T, B, I = x_ref.shape
    H = whh0_ref.shape[0]

    # One big MXU matmul: layer-0 input projections for every timestep at once.
    x2d = x_ref[...].reshape(T * B, I)                              # (T*B, I)
    xp_ref[...] = (jnp.dot(x2d, wih0_ref[...],
                           preferred_element_type=jnp.float32)
                   + b0_ref[...]).reshape(T, B, 4 * H)              # (T, B, 4H)

    whh0 = whh0_ref[...]    # (H, 4H)
    w1 = w1_ref[...]        # (2H, 4H)  == [W_ih1^T ; W_hh1^T]
    b1 = b1_ref[...]        # (1, 4H)

    def body(t, carry):
        h0, c0, h1, c1 = carry
        # layer 0: cached input projection + recurrent matmul
        g0 = xp_ref[t] + jnp.dot(h0, whh0, preferred_element_type=jnp.float32)
        h0n, c0n = _gate_update(g0, c0, H)
        # layer 1: single fused matmul over [h0_new | h1_prev]
        g1 = (jnp.dot(jnp.concatenate([h0n, h1], axis=1), w1,
                      preferred_element_type=jnp.float32) + b1)
        h1n, c1n = _gate_update(g1, c1, H)
        out_ref[t] = h1n                 # per-timestep output = top-layer hidden
        return h0n, c0n, h1n, c1n

    # encoder_hidden is None in the reference call -> zero initial states.
    z = jnp.zeros((B, H), jnp.float32)
    return jax.lax.fori_loop(0, T, body, (z, z, z, z), unroll=True)


def _make_kernel(expand):
    if expand:
        def kernel(x_ref, wih0_ref, whh0_ref, b0_ref, w1_ref, b1_ref,
                   wrs_ref, brs_ref, wrc_ref, brc_ref,
                   out_ref, states_ref, cells_ref, xp_ref):
            h0, c0, h1, c1 = _recurrence(x_ref, wih0_ref, whh0_ref, b0_ref,
                                         w1_ref, b1_ref, out_ref, xp_ref)
            B = h0.shape[0]
            L = wrs_ref.shape[1]
            # Fused reduction linears (one matmul per output, written once).
            hcat = jnp.concatenate([h0, h1], axis=0)        # (2B, H)
            ccat = jnp.concatenate([c0, c1], axis=0)        # (2B, H)
            states_ref[...] = (jnp.dot(hcat, wrs_ref[...],
                                       preferred_element_type=jnp.float32)
                               + brs_ref[...]).reshape(2, B, L)
            cells_ref[...] = (jnp.dot(ccat, wrc_ref[...],
                                      preferred_element_type=jnp.float32)
                              + brc_ref[...]).reshape(2, B, L)
    else:
        def kernel(x_ref, wih0_ref, whh0_ref, b0_ref, w1_ref, b1_ref,
                   out_ref, states_ref, cells_ref, xp_ref):
            h0, c0, h1, c1 = _recurrence(x_ref, wih0_ref, whh0_ref, b0_ref,
                                         w1_ref, b1_ref, out_ref, xp_ref)
            states_ref[0] = h0
            states_ref[1] = h1
            cells_ref[0] = c0
            cells_ref[1] = c1
    return kernel


# ----------------------------------------------------------------------------
# Wrapper
# ----------------------------------------------------------------------------
def encoder_rnn_attention_forward(input_seq, params, *, expand=True):
    """input_seq: (B, T, I) float32 (batch_first, matching the PyTorch module).

    Returns (output, (states, cells)) with
      output: (B, T, H), states/cells: (2, B, H) or (2, B, n_latent) if expand.
    """
    B, T, I = input_seq.shape
    H = params["whh0_t"].shape[0]

    x_tm = jnp.transpose(input_seq, (1, 0, 2))  # time-major (T, B, I), tiny

    vmem = pl.BlockSpec(memory_space=pltpu.MemorySpace.VMEM)

    if expand:
        L = params["w_red_s_t"].shape[1]
        args = (x_tm, params["wih0_t"], params["whh0_t"], params["b0"],
                params["w1"], params["b1"],
                params["w_red_s_t"], params["b_red_s"],
                params["w_red_c_t"], params["b_red_c"])
        out_dim = L
    else:
        args = (x_tm, params["wih0_t"], params["whh0_t"], params["b0"],
                params["w1"], params["b1"])
        out_dim = H

    out_tm, states, cells = pl.pallas_call(
        _make_kernel(expand),
        out_shape=(
            jax.ShapeDtypeStruct((T, B, H), jnp.float32),
            jax.ShapeDtypeStruct((2, B, out_dim), jnp.float32),
            jax.ShapeDtypeStruct((2, B, out_dim), jnp.float32),
        ),
        in_specs=[vmem] * len(args),
        out_specs=(vmem, vmem, vmem),
        scratch_shapes=[pltpu.VMEM((T, B, 4 * H), jnp.float32)],  # cached x-projections
    )(*args)

    output = jnp.transpose(out_tm, (1, 0, 2))  # back to batch_first (B, T, H)
    return output, (states, cells)


# ----------------------------------------------------------------------------
# Deterministic parameter init (shapes follow torch.nn.LSTM / nn.Linear)
# ----------------------------------------------------------------------------
def init_params(key, input_size, hidden_size, n_latent):
    H, I, L = hidden_size, input_size, n_latent
    k = 1.0 / jnp.sqrt(H)
    keys = jax.random.split(key, 12)
    u = lambda kk, shape, bound: jax.random.uniform(kk, shape, jnp.float32, -bound, bound)

    # layer 0
    wih0 = u(keys[0], (4 * H, I), k)
    whh0 = u(keys[1], (4 * H, H), k)
    bih0 = u(keys[2], (4 * H,), k)
    bhh0 = u(keys[3], (4 * H,), k)
    # layer 1
    wih1 = u(keys[4], (4 * H, H), k)
    whh1 = u(keys[5], (4 * H, H), k)
    bih1 = u(keys[6], (4 * H,), k)
    bhh1 = u(keys[7], (4 * H,), k)
    # reduction linears (expand=True)
    w_red_s = u(keys[8], (L, H), k)
    b_red_s = u(keys[9], (L,), k)
    w_red_c = u(keys[10], (L, H), k)
    b_red_c = u(keys[11], (L,), k)

    return {
        "wih0_t": wih0.T,                                   # (I, 4H)
        "whh0_t": whh0.T,                                   # (H, 4H)
        "b0": (bih0 + bhh0)[None, :],                       # (1, 4H)
        "w1": jnp.concatenate([wih1.T, whh1.T], axis=0),    # (2H, 4H) stacked
        "b1": (bih1 + bhh1)[None, :],                       # (1, 4H)
        "w_red_s_t": w_red_s.T, "b_red_s": b_red_s[None, :],
        "w_red_c_t": w_red_c.T, "b_red_c": b_red_c[None, :],
    }


# ----------------------------------------------------------------------------
# Pure-JAX reference (correctness check)
# ----------------------------------------------------------------------------
def reference_forward(input_seq, params, *, expand=True):
    B, T, I = input_seq.shape
    H = params["whh0_t"].shape[0]

    def gate(g, c):
        i = jax.nn.sigmoid(g[:, :H])
        f = jax.nn.sigmoid(g[:, H:2 * H])
        gg = jnp.tanh(g[:, 2 * H:3 * H])
        o = jax.nn.sigmoid(g[:, 3 * H:])
        c = f * c + i * gg
        return o * jnp.tanh(c), c

    def step(carry, x_t):
        h0, c0, h1, c1 = carry
        g0 = x_t @ params["wih0_t"] + h0 @ params["whh0_t"] + params["b0"]
        h0, c0 = gate(g0, c0)
        g1 = jnp.concatenate([h0, h1], axis=1) @ params["w1"] + params["b1"]
        h1, c1 = gate(g1, c1)
        return (h0, c0, h1, c1), h1

    z = jnp.zeros((B, H), jnp.float32)
    (h0, c0, h1, c1), outs = jax.lax.scan(step, (z, z, z, z),
                                          jnp.transpose(input_seq, (1, 0, 2)))
    output = jnp.transpose(outs, (1, 0, 2))
    states = jnp.stack([h0, h1])
    cells = jnp.stack([c0, c1])
    if expand:
        states = states @ params["w_red_s_t"] + params["b_red_s"]
        cells = cells @ params["w_red_c_t"] + params["b_red_c"]
    return output, (states, cells)


# ----------------------------------------------------------------------------
if __name__ == "__main__":
    B, T, I, H, L = 8, 8, 16, 32, 16   # batch, seq, input_size, hidden_size, n_latent

    key = jax.random.PRNGKey(0)
    kx, kp = jax.random.split(key)
    x = jax.random.normal(kx, (B, T, I), jnp.float32)
    params = init_params(kp, I, H, L)

    # expand=True path (LSTM + fused reduction linears)
    fwd = jax.jit(functools.partial(encoder_rnn_attention_forward, expand=True))
    output, (states, cells) = fwd(x, params)
    jax.block_until_ready((output, states, cells))

    ref_out, (ref_states, ref_cells) = reference_forward(x, params, expand=True)
    assert output.shape == (B, T, H)
    assert states.shape == (2, B, L) and cells.shape == (2, B, L)
    assert jnp.allclose(output, ref_out, atol=1e-4, rtol=1e-4)
    assert jnp.allclose(states, ref_states, atol=1e-4, rtol=1e-4)
    assert jnp.allclose(cells, ref_cells, atol=1e-4, rtol=1e-4)

    # expand=False path (raw final hidden/cell states)
    fwd_plain = jax.jit(functools.partial(encoder_rnn_attention_forward, expand=False))
    out2, (st2, ce2) = fwd_plain(x, params)
    jax.block_until_ready((out2, st2, ce2))

    ref_out2, (ref_st2, ref_ce2) = reference_forward(x, params, expand=False)
    assert st2.shape == (2, B, H) and ce2.shape == (2, B, H)
    assert jnp.allclose(out2, ref_out2, atol=1e-4, rtol=1e-4)
    assert jnp.allclose(st2, ref_st2, atol=1e-4, rtol=1e-4)
    assert jnp.allclose(ce2, ref_ce2, atol=1e-4, rtol=1e-4)

    print("KERNEL_OK")
</pallas_src>

<mosaic_0001>
module attributes {stable_mosaic.version = 11 : i64} {
  func.func @kernel(%arg0: memref<8x8x16xf32, #tpu.memory_space<vmem>>, %arg1: memref<16x128xf32, #tpu.memory_space<vmem>>, %arg2: memref<32x128xf32, #tpu.memory_space<vmem>>, %arg3: memref<1x128xf32, #tpu.memory_space<vmem>>, %arg4: memref<64x128xf32, #tpu.memory_space<vmem>>, %arg5: memref<1x128xf32, #tpu.memory_space<vmem>>, %arg6: memref<32x16xf32, #tpu.memory_space<vmem>>, %arg7: memref<1x16xf32, #tpu.memory_space<vmem>>, %arg8: memref<32x16xf32, #tpu.memory_space<vmem>>, %arg9: memref<1x16xf32, #tpu.memory_space<vmem>>, %arg10: memref<8x8x32xf32, #tpu.memory_space<vmem>>, %arg11: memref<2x8x16xf32, #tpu.memory_space<vmem>>, %arg12: memref<2x8x16xf32, #tpu.memory_space<vmem>>, %arg13: memref<8x8x128xf32, #tpu.memory_space<vmem>>) attributes {dimension_semantics = [], scalar_prefetch = 0 : i64, scratch_operands = 1 : i64, tpu.core_type = #tpu.core_type<tc>} {
    %c0 = arith.constant 0 : index
    %c0_0 = arith.constant 0 : index
    %c0_1 = arith.constant 0 : index
    %0 = vector.load %arg0[%c0, %c0_0, %c0_1] : memref<8x8x16xf32, #tpu.memory_space<vmem>>, vector<8x8x16xf32>
    %1 = vector.shape_cast %0 : vector<8x8x16xf32> to vector<64x16xf32>
    %c0_2 = arith.constant 0 : index
    %c0_3 = arith.constant 0 : index
    %2 = vector.load %arg1[%c0_2, %c0_3] : memref<16x128xf32, #tpu.memory_space<vmem>>, vector<16x128xf32>
    %cst = arith.constant dense<0.000000e+00> : vector<64x128xf32>
    %3 = tpu.matmul %1, %2, %cst {dimension_numbers = #tpu.dot_dimension_numbers<[1], [0], [0], [1], [0, 0, 1, 1], [], []>} : vector<64x16xf32>, vector<16x128xf32>, vector<64x128xf32> -> vector<64x128xf32>
    %c0_4 = arith.constant 0 : index
    %c0_5 = arith.constant 0 : index
    %4 = vector.load %arg3[%c0_4, %c0_5] : memref<1x128xf32, #tpu.memory_space<vmem>>, vector<1x128xf32>
    %5 = vector.broadcast %4 : vector<1x128xf32> to vector<64x128xf32>
    %6 = arith.addf %3, %5 : vector<64x128xf32>
    %7 = vector.shape_cast %6 : vector<64x128xf32> to vector<8x8x128xf32>
    %c0_6 = arith.constant 0 : index
    %c0_7 = arith.constant 0 : index
    %c0_8 = arith.constant 0 : index
    %8 = vector.load %arg13[%c0_6, %c0_7, %c0_8] : memref<8x8x128xf32, #tpu.memory_space<vmem>>, vector<8x8x128xf32>
    tpu.vector_store %arg13[%c0_6, %c0_7, %c0_8], %7 {strides = array<i32>} : memref<8x8x128xf32, #tpu.memory_space<vmem>>, vector<8x8x128xf32>,
    %c0_9 = arith.constant 0 : index
    %c0_10 = arith.constant 0 : index
    %9 = vector.load %arg2[%c0_9, %c0_10] : memref<32x128xf32, #tpu.memory_space<vmem>>, vector<32x128xf32>
    %c0_11 = arith.constant 0 : index
    %c0_12 = arith.constant 0 : index
    %10 = vector.load %arg4[%c0_11, %c0_12] : memref<64x128xf32, #tpu.memory_space<vmem>>, vector<64x128xf32>
    %c0_13 = arith.constant 0 : index
    %c0_14 = arith.constant 0 : index
    %11 = vector.load %arg5[%c0_13, %c0_14] : memref<1x128xf32, #tpu.memory_space<vmem>>, vector<1x128xf32>
    %cst_15 = arith.constant 0.000000e+00 : f32
    %12 = vector.broadcast %cst_15 : f32 to vector<8x32xf32>
    %c0_i32 = arith.constant 0 : i32
    %13 = arith.index_cast %c0_i32 : i32 to index
    %c0_16 = arith.constant 0 : index
    %c0_17 = arith.constant 0 : index
    %14 = vector.load %arg13[%13, %c0_16, %c0_17] : memref<8x8x128xf32, #tpu.memory_space<vmem>>, vector<1x8x128xf32>
    %15 = vector.shape_cast %14 : vector<1x8x128xf32> to vector<8x128xf32>
    %cst_18 = arith.constant dense<0.000000e+00> : vector<8x128xf32>
    %16 = tpu.matmul %12, %9, %cst_18 {dimension_numbers = #tpu.dot_dimension_numbers<[1], [0], [0], [1], [0, 0, 1, 1], [], []>} : vector<8x32xf32>, vector<32x128xf32>, vector<8x128xf32> -> vector<8x128xf32>
    %17 = arith.addf %15, %16 : vector<8x128xf32>
    %18 = arith.negf %17 : vector<8x128xf32>
    %19 = math.exp %18 : vector<8x128xf32>
    %cst_19 = arith.constant 1.000000e+00 : f32
    %20 = vector.broadcast %cst_19 : f32 to vector<8x128xf32>
    %21 = arith.addf %20, %19 : vector<8x128xf32>
    %22 = arith.divf %20, %21 : vector<8x128xf32>
    %23 = math.tanh %17 : vector<8x128xf32>
    %24 = vector.extract_strided_slice %22 {offsets = [0, 0], sizes = [8, 32], strides = [1, 1]} : vector<8x128xf32> to vector<8x32xf32>
    %25 = vector.extract_strided_slice %22 {offsets = [0, 32], sizes = [8, 32], strides = [1, 1]} : vector<8x128xf32> to vector<8x32xf32>
    %26 = vector.extract_strided_slice %23 {offsets = [0, 64], sizes = [8, 32], strides = [1, 1]} : vector<8x128xf32> to vector<8x32xf32>
    %27 = vector.extract_strided_slice %22 {offsets = [0, 96], sizes = [8, 32], strides = [1, 1]} : vector<8x128xf32> to vector<8x32xf32>
    %28 = arith.mulf %25, %12 : vector<8x32xf32>
    %29 = arith.mulf %24, %26 : vector<8x32xf32>
    %30 = arith.addf %28, %29 : vector<8x32xf32>
    %31 = math.tanh %30 : vector<8x32xf32>
    %32 = arith.mulf %27, %31 : vector<8x32xf32>
    %33 = tpu.concatenate %32, %12 in 1 : vector<8x32xf32>, vector<8x32xf32> -> vector<8x64xf32>
    %cst_20 = arith.constant dense<0.000000e+00> : vector<8x128xf32>
    %34 = tpu.matmul %33, %10, %cst_20 {dimension_numbers = #tpu.dot_dimension_numbers<[1], [0], [0], [1], [0, 0, 1, 1], [], []>} : vector<8x64xf32>, vector<64x128xf32>, vector<8x128xf32> -> vector<8x128xf32>
    %35 = vector.broadcast %11 : vector<1x128xf32> to vector<8x128xf32>
    %36 = arith.addf %34, %35 : vector<8x128xf32>
    %37 = arith.negf %36 : vector<8x128xf32>
    %38 = math.exp %37 : vector<8x128xf32>
    %cst_21 = arith.constant 1.000000e+00 : f32
    %39 = vector.broadcast %cst_21 : f32 to vector<8x128xf32>
    %40 = arith.addf %39, %38 : vector<8x128xf32>
    %41 = arith.divf %39, %40 : vector<8x128xf32>
    %42 = math.tanh %36 : vector<8x128xf32>
    %43 = vector.extract_strided_slice %41 {offsets = [0, 0], sizes = [8, 32], strides = [1, 1]} : vector<8x128xf32> to vector<8x32xf32>
    %44 = vector.extract_strided_slice %41 {offsets = [0, 32], sizes = [8, 32], strides = [1, 1]} : vector<8x128xf32> to vector<8x32xf32>
    %45 = vector.extract_strided_slice %42 {offsets = [0, 64], sizes = [8, 32], strides = [1, 1]} : vector<8x128xf32> to vector<8x32xf32>
    %46 = vector.extract_strided_slice %41 {offsets = [0, 96], sizes = [8, 32], strides = [1, 1]} : vector<8x128xf32> to vector<8x32xf32>
    %47 = arith.mulf %44, %12 : vector<8x32xf32>
    %48 = arith.mulf %43, %45 : vector<8x32xf32>
    %49 = arith.addf %47, %48 : vector<8x32xf32>
    %50 = math.tanh %49 : vector<8x32xf32>
    %51 = arith.mulf %46, %50 : vector<8x32xf32>
    %52 = arith.index_cast %c0_i32 : i32 to index
    %c0_22 = arith.constant 0 : index
    %c0_23 = arith.constant 0 : index
    %53 = vector.load %arg10[%52, %c0_22, %c0_23] : memref<8x8x32xf32, #tpu.memory_space<vmem>>, vector<1x8x32xf32>
    %54 = vector.shape_cast %53 : vector<1x8x32xf32> to vector<8x32xf32>
    %55 = vector.shape_cast %51 : vector<8x32xf32> to vector<1x8x32xf32>
    tpu.vector_store %arg10[%52, %c0_22, %c0_23], %55 {strides = array<i32>} : memref<8x8x32xf32, #tpu.memory_space<vmem>>, vector<1x8x32xf32>,
    %c1_i32 = arith.constant 1 : i32
    %56 = arith.index_cast %c1_i32 : i32 to index
    %c0_24 = arith.constant 0 : index
    %c0_25 = arith.constant 0 : index
    %57 = vector.load %arg13[%56, %c0_24, %c0_25] : memref<8x8x128xf32, #tpu.memory_space<vmem>>, vector<1x8x128xf32>
    %58 = vector.shape_cast %57 : vector<1x8x128xf32> to vector<8x128xf32>
    %cst_26 = arith.constant dense<0.000000e+00> : vector<8x128xf32>
    %59 = tpu.matmul %32, %9, %cst_26 {dimension_numbers = #tpu.dot_dimension_numbers<[1], [0], [0], [1], [0, 0, 1, 1], [], []>} : vector<8x32xf32>, vector<32x128xf32>, vector<8x128xf32> -> vector<8x128xf32>
    %60 = arith.addf %58, %59 : vector<8x128xf32>
    %61 = arith.negf %60 : vector<8x128xf32>
    %62 = math.exp %61 : vector<8x128xf32>
    %cst_27 = arith.constant 1.000000e+00 : f32
    %63 = vector.broadcast %cst_27 : f32 to vector<8x128xf32>
    %64 = arith.addf %63, %62 : vector<8x128xf32>
    %65 = arith.divf %63, %64 : vector<8x128xf32>
    %66 = math.tanh %60 : vector<8x128xf32>
    %67 = vector.extract_strided_slice %65 {offsets = [0, 0], sizes = [8, 32], strides = [1, 1]} : vector<8x128xf32> to vector<8x32xf32>
    %68 = vector.extract_strided_slice %65 {offsets = [0, 32], sizes = [8, 32], strides = [1, 1]} : vector<8x128xf32> to vector<8x32xf32>
    %69 = vector.extract_strided_slice %66 {offsets = [0, 64], sizes = [8, 32], strides = [1, 1]} : vector<8x128xf32> to vector<8x32xf32>
    %70 = vector.extract_strided_slice %65 {offsets = [0, 96], sizes = [8, 32], strides = [1, 1]} : vector<8x128xf32> to vector<8x32xf32>
    %71 = arith.mulf %68, %30 : vector<8x32xf32>
    %72 = arith.mulf %67, %69 : vector<8x32xf32>
    %73 = arith.addf %71, %72 : vector<8x32xf32>
    %74 = math.tanh %73 : vector<8x32xf32>
    %75 = arith.mulf %70, %74 : vector<8x32xf32>
    %76 = tpu.concatenate %75, %51 in 1 : vector<8x32xf32>, vector<8x32xf32> -> vector<8x64xf32>
    %cst_28 = arith.constant dense<0.000000e+00> : vector<8x128xf32>
    %77 = tpu.matmul %76, %10, %cst_28 {dimension_numbers = #tpu.dot_dimension_numbers<[1], [0], [0], [1], [0, 0, 1, 1], [], []>} : vector<8x64xf32>, vector<64x128xf32>, vector<8x128xf32> -> vector<8x128xf32>
    %78 = vector.broadcast %11 : vector<1x128xf32> to vector<8x128xf32>
    %79 = arith.addf %77, %78 : vector<8x128xf32>
    %80 = arith.negf %79 : vector<8x128xf32>
    %81 = math.exp %80 : vector<8x128xf32>
    %cst_29 = arith.constant 1.000000e+00 : f32
    %82 = vector.broadcast %cst_29 : f32 to vector<8x128xf32>
    %83 = arith.addf %82, %81 : vector<8x128xf32>
    %84 = arith.divf %82, %83 : vector<8x128xf32>
    %85 = math.tanh %79 : vector<8x128xf32>
    %86 = vector.extract_strided_slice %84 {offsets = [0, 0], sizes = [8, 32], strides = [1, 1]} : vector<8x128xf32> to vector<8x32xf32>
    %87 = vector.extract_strided_slice %84 {offsets = [0, 32], sizes = [8, 32], strides = [1, 1]} : vector<8x128xf32> to vector<8x32xf32>
    %88 = vector.extract_strided_slice %85 {offsets = [0, 64], sizes = [8, 32], strides = [1, 1]} : vector<8x128xf32> to vector<8x32xf32>
    %89 = vector.extract_strided_slice %84 {offsets = [0, 96], sizes = [8, 32], strides = [1, 1]} : vector<8x128xf32> to vector<8x32xf32>
    %90 = arith.mulf %87, %49 : vector<8x32xf32>
    %91 = arith.mulf %86, %88 : vector<8x32xf32>
    %92 = arith.addf %90, %91 : vector<8x32xf32>
    %93 = math.tanh %92 : vector<8x32xf32>
    %94 = arith.mulf %89, %93 : vector<8x32xf32>
    %95 = arith.index_cast %c1_i32 : i32 to index
    %c0_30 = arith.constant 0 : index
    %c0_31 = arith.constant 0 : index
    %96 = vector.load %arg10[%95, %c0_30, %c0_31] : memref<8x8x32xf32, #tpu.memory_space<vmem>>, vector<1x8x32xf32>
    %97 = vector.shape_cast %96 : vector<1x8x32xf32> to vector<8x32xf32>
    %98 = vector.shape_cast %94 : vector<8x32xf32> to vector<1x8x32xf32>
    tpu.vector_store %arg10[%95, %c0_30, %c0_31], %98 {strides = array<i32>} : memref<8x8x32xf32, #tpu.memory_space<vmem>>, vector<1x8x32xf32>,
    %c2_i32 = arith.constant 2 : i32
    %99 = arith.index_cast %c2_i32 : i32 to index
    %c0_32 = arith.constant 0 : index
    %c0_33 = arith.constant 0 : index
    %100 = vector.load %arg13[%99, %c0_32, %c0_33] : memref<8x8x128xf32, #tpu.memory_space<vmem>>, vector<1x8x128xf32>
    %101 = vector.shape_cast %100 : vector<1x8x128xf32> to vector<8x128xf32>
    %cst_34 = arith.constant dense<0.000000e+00> : vector<8x128xf32>
    %102 = tpu.matmul %75, %9, %cst_34 {dimension_numbers = #tpu.dot_dimension_numbers<[1], [0], [0], [1], [0, 0, 1, 1], [], []>} : vector<8x32xf32>, vector<32x128xf32>, vector<8x128xf32> -> vector<8x128xf32>
    %103 = arith.addf %101, %102 : vector<8x128xf32>
    %104 = arith.negf %103 : vector<8x128xf32>
    %105 = math.exp %104 : vector<8x128xf32>
    %cst_35 = arith.constant 1.000000e+00 : f32
    %106 = vector.broadcast %cst_35 : f32 to vector<8x128xf32>
    %107 = arith.addf %106, %105 : vector<8x128xf32>
    %108 = arith.divf %106, %107 : vector<8x128xf32>
    %109 = math.tanh %103 : vector<8x128xf32>
    %110 = vector.extract_strided_slice %108 {offsets = [0, 0], sizes = [8, 32], strides = [1, 1]} : vector<8x128xf32> to vector<8x32xf32>
    %111 = vector.extract_strided_slice %108 {offsets = [0, 32], sizes = [8, 32], strides = [1, 1]} : vector<8x128xf32> to vector<8x32xf32>
    %112 = vector.extract_strided_slice %109 {offsets = [0, 64], sizes = [8, 32], strides = [1, 1]} : vector<8x128xf32> to vector<8x32xf32>
    %113 = vector.extract_strided_slice %108 {offsets = [0, 96], sizes = [8, 32], strides = [1, 1]} : vector<8x128xf32> to vector<8x32xf32>
    %114 = arith.mulf %111, %73 : vector<8x32xf32>
    %115 = arith.mulf %110, %112 : vector<8x32xf32>
    %116 = arith.addf %114, %115 : vector<8x32xf32>
    %117 = math.tanh %116 : vector<8x32xf32>
    %118 = arith.mulf %113, %117 : vector<8x32xf32>
    %119 = tpu.concatenate %118, %94 in 1 : vector<8x32xf32>, vector<8x32xf32> -> vector<8x64xf32>
    %cst_36 = arith.constant dense<0.000000e+00> : vector<8x128xf32>
    %120 = tpu.matmul %119, %10, %cst_36 {dimension_numbers = #tpu.dot_dimension_numbers<[1], [0], [0], [1], [0, 0, 1, 1], [], []>} : vector<8x64xf32>, vector<64x128xf32>, vector<8x128xf32> -> vector<8x128xf32>
    %121 = vector.broadcast %11 : vector<1x128xf32> to vector<8x128xf32>
    %122 = arith.addf %120, %121 : vector<8x128xf32>
    %123 = arith.negf %122 : vector<8x128xf32>
    %124 = math.exp %123 : vector<8x128xf32>
    %cst_37 = arith.constant 1.000000e+00 : f32
    %125 = vector.broadcast %cst_37 : f32 to vector<8x128xf32>
    %126 = arith.addf %125, %124 : vector<8x128xf32>
    %127 = arith.divf %125, %126 : vector<8x128xf32>
    %128 = math.tanh %122 : vector<8x128xf32>
    %129 = vector.extract_strided_slice %127 {offsets = [0, 0], sizes = [8, 32], strides = [1, 1]} : vector<8x128xf32> to vector<8x32xf32>
    %130 = vector.extract_strided_slice %127 {offsets = [0, 32], sizes = [8, 32], strides = [1, 1]} : vector<8x128xf32> to vector<8x32xf32>
    %131 = vector.extract_strided_slice %128 {offsets = [0, 64], sizes = [8, 32], strides = [1, 1]} : vector<8x128xf32> to vector<8x32xf32>
    %132 = vector.extract_strided_slice %127 {offsets = [0, 96], sizes = [8, 32], strides = [1, 1]} : vector<8x128xf32> to vector<8x32xf32>
    %133 = arith.mulf %130, %92 : vector<8x32xf32>
    %134 = arith.mulf %129, %131 : vector<8x32xf32>
    %135 = arith.addf %133, %134 : vector<8x32xf32>
    %136 = math.tanh %135 : vector<8x32xf32>
    %137 = arith.mulf %132, %136 : vector<8x32xf32>
    %138 = arith.index_cast %c2_i32 : i32 to index
    %c0_38 = arith.constant 0 : index
    %c0_39 = arith.constant 0 : index
    %139 = vector.load %arg10[%138, %c0_38, %c0_39] : memref<8x8x32xf32, #tpu.memory_space<vmem>>, vector<1x8x32xf32>
    %140 = vector.shape_cast %139 : vector<1x8x32xf32> to vector<8x32xf32>
    %141 = vector.shape_cast %137 : vector<8x32xf32> to vector<1x8x32xf32>
    tpu.vector_store %arg10[%138, %c0_38, %c0_39], %141 {strides = array<i32>} : memref<8x8x32xf32, #tpu.memory_space<vmem>>, vector<1x8x32xf32>,
    %c3_i32 = arith.constant 3 : i32
    %142 = arith.index_cast %c3_i32 : i32 to index
    %c0_40 = arith.constant 0 : index
    %c0_41 = arith.constant 0 : index
    %143 = vector.load %arg13[%142, %c0_40, %c0_41] : memref<8x8x128xf32, #tpu.memory_space<vmem>>, vector<1x8x128xf32>
    %144 = vector.shape_cast %143 : vector<1x8x128xf32> to vector<8x128xf32>
    %cst_42 = arith.constant dense<0.000000e+00> : vector<8x128xf32>
    %145 = tpu.matmul %118, %9, %cst_42 {dimension_numbers = #tpu.dot_dimension_numbers<[1], [0], [0], [1], [0, 0, 1, 1], [], []>} : vector<8x32xf32>, vector<32x128xf32>, vector<8x128xf32> -> vector<8x128xf32>
    %146 = arith.addf %144, %145 : vector<8x128xf32>
    %147 = arith.negf %146 : vector<8x128xf32>
    %148 = math.exp %147 : vector<8x128xf32>
    %cst_43 = arith.constant 1.000000e+00 : f32
    %149 = vector.broadcast %cst_43 : f32 to vector<8x128xf32>
    %150 = arith.addf %149, %148 : vector<8x128xf32>
    %151 = arith.divf %149, %150 : vector<8x128xf32>
    %152 = math.tanh %146 : vector<8x128xf32>
    %153 = vector.extract_strided_slice %151 {offsets = [0, 0], sizes = [8, 32], strides = [1, 1]} : vector<8x128xf32> to vector<8x32xf32>
    %154 = vector.extract_strided_slice %151 {offsets = [0, 32], sizes = [8, 32], strides = [1, 1]} : vector<8x128xf32> to vector<8x32xf32>
    %155 = vector.extract_strided_slice %152 {offsets = [0, 64], sizes = [8, 32], strides = [1, 1]} : vector<8x128xf32> to vector<8x32xf32>
    %156 = vector.extract_strided_slice %151 {offsets = [0, 96], sizes = [8, 32], strides = [1, 1]} : vector<8x128xf32> to vector<8x32xf32>
    %157 = arith.mulf %154, %116 : vector<8x32xf32>
    %158 = arith.mulf %153, %155 : vector<8x32xf32>
    %159 = arith.addf %157, %158 : vector<8x32xf32>
    %160 = math.tanh %159 : vector<8x32xf32>
    %161 = arith.mulf %156, %160 : vector<8x32xf32>
    %162 = tpu.concatenate %161, %137 in 1 : vector<8x32xf32>, vector<8x32xf32> -> vector<8x64xf32>
    %cst_44 = arith.constant dense<0.000000e+00> : vector<8x128xf32>
    %163 = tpu.matmul %162, %10, %cst_44 {dimension_numbers = #tpu.dot_dimension_numbers<[1], [0], [0], [1], [0, 0, 1, 1], [], []>} : vector<8x64xf32>, vector<64x128xf32>, vector<8x128xf32> -> vector<8x128xf32>
    %164 = vector.broadcast %11 : vector<1x128xf32> to vector<8x128xf32>
    %165 = arith.addf %163, %164 : vector<8x128xf32>
    %166 = arith.negf %165 : vector<8x128xf32>
    %167 = math.exp %166 : vector<8x128xf32>
    %cst_45 = arith.constant 1.000000e+00 : f32
    %168 = vector.broadcast %cst_45 : f32 to vector<8x128xf32>
    %169 = arith.addf %168, %167 : vector<8x128xf32>
    %170 = arith.divf %168, %169 : vector<8x128xf32>
    %171 = math.tanh %165 : vector<8x128xf32>
    %172 = vector.extract_strided_slice %170 {offsets = [0, 0], sizes = [8, 32], strides = [1, 1]} : vector<8x128xf32> to vector<8x32xf32>
    %173 = vector.extract_strided_slice %170 {offsets = [0, 32], sizes = [8, 32], strides = [1, 1]} : vector<8x128xf32> to vector<8x32xf32>
    %174 = vector.extract_strided_slice %171 {offsets = [0, 64], sizes = [8, 32], strides = [1, 1]} : vector<8x128xf32> to vector<8x32xf32>
    %175 = vector.extract_strided_slice %170 {offsets = [0, 96], sizes = [8, 32], strides = [1, 1]} : vector<8x128xf32> to vector<8x32xf32>
    %176 = arith.mulf %173, %135 : vector<8x32xf32>
    %177 = arith.mulf %172, %174 : vector<8x32xf32>
    %178 = arith.addf %176, %177 : vector<8x32xf32>
    %179 = math.tanh %178 : vector<8x32xf32>
    %180 = arith.mulf %175, %179 : vector<8x32xf32>
    %181 = arith.index_cast %c3_i32 : i32 to index
    %c0_46 = arith.constant 0 : index
    %c0_47 = arith.constant 0 : index
    %182 = vector.load %arg10[%181, %c0_46, %c0_47] : memref<8x8x32xf32, #tpu.memory_space<vmem>>, vector<1x8x32xf32>
    %183 = vector.shape_cast %182 : vector<1x8x32xf32> to vector<8x32xf32>
    %184 = vector.shape_cast %180 : vector<8x32xf32> to vector<1x8x32xf32>
    tpu.vector_store %arg10[%181, %c0_46, %c0_47], %184 {strides = array<i32>} : memref<8x8x32xf32, #tpu.memory_space<vmem>>, vector<1x8x32xf32>,
    %c4_i32 = arith.constant 4 : i32
    %185 = arith.index_cast %c4_i32 : i32 to index
    %c0_48 = arith.constant 0 : index
    %c0_49 = arith.constant 0 : index
    %186 = vector.load %arg13[%185, %c0_48, %c0_49] : memref<8x8x128xf32, #tpu.memory_space<vmem>>, vector<1x8x128xf32>
    %187 = vector.shape_cast %186 : vector<1x8x128xf32> to vector<8x128xf32>
    %cst_50 = arith.constant dense<0.000000e+00> : vector<8x128xf32>
    %188 = tpu.matmul %161, %9, %cst_50 {dimension_numbers = #tpu.dot_dimension_numbers<[1], [0], [0], [1], [0, 0, 1, 1], [], []>} : vector<8x32xf32>, vector<32x128xf32>, vector<8x128xf32> -> vector<8x128xf32>
    %189 = arith.addf %187, %188 : vector<8x128xf32>
    %190 = arith.negf %189 : vector<8x128xf32>
    %191 = math.exp %190 : vector<8x128xf32>
    %cst_51 = arith.constant 1.000000e+00 : f32
    %192 = vector.broadcast %cst_51 : f32 to vector<8x128xf32>
    %193 = arith.addf %192, %191 : vector<8x128xf32>
    %194 = arith.divf %192, %193 : vector<8x128xf32>
    %195 = math.tanh %189 : vector<8x128xf32>
    %196 = vector.extract_strided_slice %194 {offsets = [0, 0], sizes = [8, 32], strides = [1, 1]} : vector<8x128xf32> to vector<8x32xf32>
    %197 = vector.extract_strided_slice %194 {offsets = [0, 32], sizes = [8, 32], strides = [1, 1]} : vector<8x128xf32> to vector<8x32xf32>
    %198 = vector.extract_strided_slice %195 {offsets = [0, 64], sizes = [8, 32], strides = [1, 1]} : vector<8x128xf32> to vector<8x32xf32>
    %199 = vector.extract_strided_slice %194 {offsets = [0, 96], sizes = [8, 32], strides = [1, 1]} : vector<8x128xf32> to vector<8x32xf32>
    %200 = arith.mulf %197, %159 : vector<8x32xf32>
    %201 = arith.mulf %196, %198 : vector<8x32xf32>
    %202 = arith.addf %200, %201 : vector<8x32xf32>
    %203 = math.tanh %202 : vector<8x32xf32>
    %204 = arith.mulf %199, %203 : vector<8x32xf32>
    %205 = tpu.concatenate %204, %180 in 1 : vector<8x32xf32>, vector<8x32xf32> -> vector<8x64xf32>
    %cst_52 = arith.constant dense<0.000000e+00> : vector<8x128xf32>
    %206 = tpu.matmul %205, %10, %cst_52 {dimension_numbers = #tpu.dot_dimension_numbers<[1], [0], [0], [1], [0, 0, 1, 1], [], []>} : vector<8x64xf32>, vector<64x128xf32>, vector<8x128xf32> -> vector<8x128xf32>
    %207 = vector.broadcast %11 : vector<1x128xf32> to vector<8x128xf32>
    %208 = arith.addf %206, %207 : vector<8x128xf32>
    %209 = arith.negf %208 : vector<8x128xf32>
    %210 = math.exp %209 : vector<8x128xf32>
    %cst_53 = arith.constant 1.000000e+00 : f32
    %211 = vector.broadcast %cst_53 : f32 to vector<8x128xf32>
    %212 = arith.addf %211, %210 : vector<8x128xf32>
    %213 = arith.divf %211, %212 : vector<8x128xf32>
    %214 = math.tanh %208 : vector<8x128xf32>
    %215 = vector.extract_strided_slice %213 {offsets = [0, 0], sizes = [8, 32], strides = [1, 1]} : vector<8x128xf32> to vector<8x32xf32>
    %216 = vector.extract_strided_slice %213 {offsets = [0, 32], sizes = [8, 32], strides = [1, 1]} : vector<8x128xf32> to vector<8x32xf32>
    %217 = vector.extract_strided_slice %214 {offsets = [0, 64], sizes = [8, 32], strides = [1, 1]} : vector<8x128xf32> to vector<8x32xf32>
    %218 = vector.extract_strided_slice %213 {offsets = [0, 96], sizes = [8, 32], strides = [1, 1]} : vector<8x128xf32> to vector<8x32xf32>
    %219 = arith.mulf %216, %178 : vector<8x32xf32>
    %220 = arith.mulf %215, %217 : vector<8x32xf32>
    %221 = arith.addf %219, %220 : vector<8x32xf32>
    %222 = math.tanh %221 : vector<8x32xf32>
    %223 = arith.mulf %218, %222 : vector<8x32xf32>
    %224 = arith.index_cast %c4_i32 : i32 to index
    %c0_54 = arith.constant 0 : index
    %c0_55 = arith.constant 0 : index
    %225 = vector.load %arg10[%224, %c0_54, %c0_55] : memref<8x8x32xf32, #tpu.memory_space<vmem>>, vector<1x8x32xf32>
    %226 = vector.shape_cast %225 : vector<1x8x32xf32> to vector<8x32xf32>
    %227 = vector.shape_cast %223 : vector<8x32xf32> to vector<1x8x32xf32>
    tpu.vector_store %arg10[%224, %c0_54, %c0_55], %227 {strides = array<i32>} : memref<8x8x32xf32, #tpu.memory_space<vmem>>, vector<1x8x32xf32>,
    %c5_i32 = arith.constant 5 : i32
    %228 = arith.index_cast %c5_i32 : i32 to index
    %c0_56 = arith.constant 0 : index
    %c0_57 = arith.constant 0 : index
    %229 = vector.load %arg13[%228, %c0_56, %c0_57] : memref<8x8x128xf32, #tpu.memory_space<vmem>>, vector<1x8x128xf32>
    %230 = vector.shape_cast %229 : vector<1x8x128xf32> to vector<8x128xf32>
    %cst_58 = arith.constant dense<0.000000e+00> : vector<8x128xf32>
    %231 = tpu.matmul %204, %9, %cst_58 {dimension_numbers = #tpu.dot_dimension_numbers<[1], [0], [0], [1], [0, 0, 1, 1], [], []>} : vector<8x32xf32>, vector<32x128xf32>, vector<8x128xf32> -> vector<8x128xf32>
    %232 = arith.addf %230, %231 : vector<8x128xf32>
    %233 = arith.negf %232 : vector<8x128xf32>
    %234 = math.exp %233 : vector<8x128xf32>
    %cst_59 = arith.constant 1.000000e+00 : f32
    %235 = vector.broadcast %cst_59 : f32 to vector<8x128xf32>
    %236 = arith.addf %235, %234 : vector<8x128xf32>
    %237 = arith.divf %235, %236 : vector<8x128xf32>
    %238 = math.tanh %232 : vector<8x128xf32>
    %239 = vector.extract_strided_slice %237 {offsets = [0, 0], sizes = [8, 32], strides = [1, 1]} : vector<8x128xf32> to vector<8x32xf32>
    %240 = vector.extract_strided_slice %237 {offsets = [0, 32], sizes = [8, 32], strides = [1, 1]} : vector<8x128xf32> to vector<8x32xf32>
    %241 = vector.extract_strided_slice %238 {offsets = [0, 64], sizes = [8, 32], strides = [1, 1]} : vector<8x128xf32> to vector<8x32xf32>
    %242 = vector.extract_strided_slice %237 {offsets = [0, 96], sizes = [8, 32], strides = [1, 1]} : vector<8x128xf32> to vector<8x32xf32>
    %243 = arith.mulf %240, %202 : vector<8x32xf32>
    %244 = arith.mulf %239, %241 : vector<8x32xf32>
    %245 = arith.addf %243, %244 : vector<8x32xf32>
    %246 = math.tanh %245 : vector<8x32xf32>
    %247 = arith.mulf %242, %246 : vector<8x32xf32>
    %248 = tpu.concatenate %247, %223 in 1 : vector<8x32xf32>, vector<8x32xf32> -> vector<8x64xf32>
    %cst_60 = arith.constant dense<0.000000e+00> : vector<8x128xf32>
    %249 = tpu.matmul %248, %10, %cst_60 {dimension_numbers = #tpu.dot_dimension_numbers<[1], [0], [0], [1], [0, 0, 1, 1], [], []>} : vector<8x64xf32>, vector<64x128xf32>, vector<8x128xf32> -> vector<8x128xf32>
    %250 = vector.broadcast %11 : vector<1x128xf32> to vector<8x128xf32>
    %251 = arith.addf %249, %250 : vector<8x128xf32>
    %252 = arith.negf %251 : vector<8x128xf32>
    %253 = math.exp %252 : vector<8x128xf32>
    %cst_61 = arith.constant 1.000000e+00 : f32
    %254 = vector.broadcast %cst_61 : f32 to vector<8x128xf32>
    %255 = arith.addf %254, %253 : vector<8x128xf32>
    %256 = arith.divf %254, %255 : vector<8x128xf32>
    %257 = math.tanh %251 : vector<8x128xf32>
    %258 = vector.extract_strided_slice %256 {offsets = [0, 0], sizes = [8, 32], strides = [1, 1]} : vector<8x128xf32> to vector<8x32xf32>
    %259 = vector.extract_strided_slice %256 {offsets = [0, 32], sizes = [8, 32], strides = [1, 1]} : vector<8x128xf32> to vector<8x32xf32>
    %260 = vector.extract_strided_slice %257 {offsets = [0, 64], sizes = [8, 32], strides = [1, 1]} : vector<8x128xf32> to vector<8x32xf32>
    %261 = vector.extract_strided_slice %256 {offsets = [0, 96], sizes = [8, 32], strides = [1, 1]} : vector<8x128xf32> to vector<8x32xf32>
    %262 = arith.mulf %259, %221 : vector<8x32xf32>
    %263 = arith.mulf %258, %260 : vector<8x32xf32>
    %264 = arith.addf %262, %263 : vector<8x32xf32>
    %265 = math.tanh %264 : vector<8x32xf32>
    %266 = arith.mulf %261, %265 : vector<8x32xf32>
    %267 = arith.index_cast %c5_i32 : i32 to index
    %c0_62 = arith.constant 0 : index
    %c0_63 = arith.constant 0 : index
    %268 = vector.load %arg10[%267, %c0_62, %c0_63] : memref<8x8x32xf32, #tpu.memory_space<vmem>>, vector<1x8x32xf32>
    %269 = vector.shape_cast %268 : vector<1x8x32xf32> to vector<8x32xf32>
    %270 = vector.shape_cast %266 : vector<8x32xf32> to vector<1x8x32xf32>
    tpu.vector_store %arg10[%267, %c0_62, %c0_63], %270 {strides = array<i32>} : memref<8x8x32xf32, #tpu.memory_space<vmem>>, vector<1x8x32xf32>,
    %c6_i32 = arith.constant 6 : i32
    %271 = arith.index_cast %c6_i32 : i32 to index
    %c0_64 = arith.constant 0 : index
    %c0_65 = arith.constant 0 : index
    %272 = vector.load %arg13[%271, %c0_64, %c0_65] : memref<8x8x128xf32, #tpu.memory_space<vmem>>, vector<1x8x128xf32>
    %273 = vector.shape_cast %272 : vector<1x8x128xf32> to vector<8x128xf32>
    %cst_66 = arith.constant dense<0.000000e+00> : vector<8x128xf32>
    %274 = tpu.matmul %247, %9, %cst_66 {dimension_numbers = #tpu.dot_dimension_numbers<[1], [0], [0], [1], [0, 0, 1, 1], [], []>} : vector<8x32xf32>, vector<32x128xf32>, vector<8x128xf32> -> vector<8x128xf32>
    %275 = arith.addf %273, %274 : vector<8x128xf32>
    %276 = arith.negf %275 : vector<8x128xf32>
    %277 = math.exp %276 : vector<8x128xf32>
    %cst_67 = arith.constant 1.000000e+00 : f32
    %278 = vector.broadcast %cst_67 : f32 to vector<8x128xf32>
    %279 = arith.addf %278, %277 : vector<8x128xf32>
    %280 = arith.divf %278, %279 : vector<8x128xf32>
    %281 = math.tanh %275 : vector<8x128xf32>
    %282 = vector.extract_strided_slice %280 {offsets = [0, 0], sizes = [8, 32], strides = [1, 1]} : vector<8x128xf32> to vector<8x32xf32>
    %283 = vector.extract_strided_slice %280 {offsets = [0, 32], sizes = [8, 32], strides = [1, 1]} : vector<8x128xf32> to vector<8x32xf32>
    %284 = vector.extract_strided_slice %281 {offsets = [0, 64], sizes = [8, 32], strides = [1, 1]} : vector<8x128xf32> to vector<8x32xf32>
    %285 = vector.extract_strided_slice %280 {offsets = [0, 96], sizes = [8, 32], strides = [1, 1]} : vector<8x128xf32> to vector<8x32xf32>
    %286 = arith.mulf %283, %245 : vector<8x32xf32>
    %287 = arith.mulf %282, %284 : vector<8x32xf32>
    %288 = arith.addf %286, %287 : vector<8x32xf32>
    %289 = math.tanh %288 : vector<8x32xf32>
    %290 = arith.mulf %285, %289 : vector<8x32xf32>
    %291 = tpu.concatenate %290, %266 in 1 : vector<8x32xf32>, vector<8x32xf32> -> vector<8x64xf32>
    %cst_68 = arith.constant dense<0.000000e+00> : vector<8x128xf32>
    %292 = tpu.matmul %291, %10, %cst_68 {dimension_numbers = #tpu.dot_dimension_numbers<[1], [0], [0], [1], [0, 0, 1, 1], [], []>} : vector<8x64xf32>, vector<64x128xf32>, vector<8x128xf32> -> vector<8x128xf32>
    %293 = vector.broadcast %11 : vector<1x128xf32> to vector<8x128xf32>
    %294 = arith.addf %292, %293 : vector<8x128xf32>
    %295 = arith.negf %294 : vector<8x128xf32>
    %296 = math.exp %295 : vector<8x128xf32>
    %cst_69 = arith.constant 1.000000e+00 : f32
    %297 = vector.broadcast %cst_69 : f32 to vector<8x128xf32>
    %298 = arith.addf %297, %296 : vector<8x128xf32>
    %299 = arith.divf %297, %298 : vector<8x128xf32>
    %300 = math.tanh %294 : vector<8x128xf32>
    %301 = vector.extract_strided_slice %299 {offsets = [0, 0], sizes = [8, 32], strides = [1, 1]} : vector<8x128xf32> to vector<8x32xf32>
    %302 = vector.extract_strided_slice %299 {offsets = [0, 32], sizes = [8, 32], strides = [1, 1]} : vector<8x128xf32> to vector<8x32xf32>
    %303 = vector.extract_strided_slice %300 {offsets = [0, 64], sizes = [8, 32], strides = [1, 1]} : vector<8x128xf32> to vector<8x32xf32>
    %304 = vector.extract_strided_slice %299 {offsets = [0, 96], sizes = [8, 32], strides = [1, 1]} : vector<8x128xf32> to vector<8x32xf32>
    %305 = arith.mulf %302, %264 : vector<8x32xf32>
    %306 = arith.mulf %301, %303 : vector<8x32xf32>
    %307 = arith.addf %305, %306 : vector<8x32xf32>
    %308 = math.tanh %307 : vector<8x32xf32>
    %309 = arith.mulf %304, %308 : vector<8x32xf32>
    %310 = arith.index_cast %c6_i32 : i32 to index
    %c0_70 = arith.constant 0 : index
    %c0_71 = arith.constant 0 : index
    %311 = vector.load %arg10[%310, %c0_70, %c0_71] : memref<8x8x32xf32, #tpu.memory_space<vmem>>, vector<1x8x32xf32>
    %312 = vector.shape_cast %311 : vector<1x8x32xf32> to vector<8x32xf32>
    %313 = vector.shape_cast %309 : vector<8x32xf32> to vector<1x8x32xf32>
    tpu.vector_store %arg10[%310, %c0_70, %c0_71], %313 {strides = array<i32>} : memref<8x8x32xf32, #tpu.memory_space<vmem>>, vector<1x8x32xf32>,
    %c7_i32 = arith.constant 7 : i32
    %314 = arith.index_cast %c7_i32 : i32 to index
    %c0_72 = arith.constant 0 : index
    %c0_73 = arith.constant 0 : index
    %315 = vector.load %arg13[%314, %c0_72, %c0_73] : memref<8x8x128xf32, #tpu.memory_space<vmem>>, vector<1x8x128xf32>
    %316 = vector.shape_cast %315 : vector<1x8x128xf32> to vector<8x128xf32>
    %cst_74 = arith.constant dense<0.000000e+00> : vector<8x128xf32>
    %317 = tpu.matmul %290, %9, %cst_74 {dimension_numbers = #tpu.dot_dimension_numbers<[1], [0], [0], [1], [0, 0, 1, 1], [], []>} : vector<8x32xf32>, vector<32x128xf32>, vector<8x128xf32> -> vector<8x128xf32>
    %318 = arith.addf %316, %317 : vector<8x128xf32>
    %319 = arith.negf %318 : vector<8x128xf32>
    %320 = math.exp %319 : vector<8x128xf32>
    %cst_75 = arith.constant 1.000000e+00 : f32
    %321 = vector.broadcast %cst_75 : f32 to vector<8x128xf32>
    %322 = arith.addf %321, %320 : vector<8x128xf32>
    %323 = arith.divf %321, %322 : vector<8x128xf32>
    %324 = math.tanh %318 : vector<8x128xf32>
    %325 = vector.extract_strided_slice %323 {offsets = [0, 0], sizes = [8, 32], strides = [1, 1]} : vector<8x128xf32> to vector<8x32xf32>
    %326 = vector.extract_strided_slice %323 {offsets = [0, 32], sizes = [8, 32], strides = [1, 1]} : vector<8x128xf32> to vector<8x32xf32>
    %327 = vector.extract_strided_slice %324 {offsets = [0, 64], sizes = [8, 32], strides = [1, 1]} : vector<8x128xf32> to vector<8x32xf32>
    %328 = vector.extract_strided_slice %323 {offsets = [0, 96], sizes = [8, 32], strides = [1, 1]} : vector<8x128xf32> to vector<8x32xf32>
    %329 = arith.mulf %326, %288 : vector<8x32xf32>
    %330 = arith.mulf %325, %327 : vector<8x32xf32>
    %331 = arith.addf %329, %330 : vector<8x32xf32>
    %332 = math.tanh %331 : vector<8x32xf32>
    %333 = arith.mulf %328, %332 : vector<8x32xf32>
    %334 = tpu.concatenate %333, %309 in 1 : vector<8x32xf32>, vector<8x32xf32> -> vector<8x64xf32>
    %cst_76 = arith.constant dense<0.000000e+00> : vector<8x128xf32>
    %335 = tpu.matmul %334, %10, %cst_76 {dimension_numbers = #tpu.dot_dimension_numbers<[1], [0], [0], [1], [0, 0, 1, 1], [], []>} : vector<8x64xf32>, vector<64x128xf32>, vector<8x128xf32> -> vector<8x128xf32>
    %336 = vector.broadcast %11 : vector<1x128xf32> to vector<8x128xf32>
    %337 = arith.addf %335, %336 : vector<8x128xf32>
    %338 = arith.negf %337 : vector<8x128xf32>
    %339 = math.exp %338 : vector<8x128xf32>
    %cst_77 = arith.constant 1.000000e+00 : f32
    %340 = vector.broadcast %cst_77 : f32 to vector<8x128xf32>
    %341 = arith.addf %340, %339 : vector<8x128xf32>
    %342 = arith.divf %340, %341 : vector<8x128xf32>
    %343 = math.tanh %337 : vector<8x128xf32>
    %344 = vector.extract_strided_slice %342 {offsets = [0, 0], sizes = [8, 32], strides = [1, 1]} : vector<8x128xf32> to vector<8x32xf32>
    %345 = vector.extract_strided_slice %342 {offsets = [0, 32], sizes = [8, 32], strides = [1, 1]} : vector<8x128xf32> to vector<8x32xf32>
    %346 = vector.extract_strided_slice %343 {offsets = [0, 64], sizes = [8, 32], strides = [1, 1]} : vector<8x128xf32> to vector<8x32xf32>
    %347 = vector.extract_strided_slice %342 {offsets = [0, 96], sizes = [8, 32], strides = [1, 1]} : vector<8x128xf32> to vector<8x32xf32>
    %348 = arith.mulf %345, %307 : vector<8x32xf32>
    %349 = arith.mulf %344, %346 : vector<8x32xf32>
    %350 = arith.addf %348, %349 : vector<8x32xf32>
    %351 = math.tanh %350 : vector<8x32xf32>
    %352 = arith.mulf %347, %351 : vector<8x32xf32>
    %353 = arith.index_cast %c7_i32 : i32 to index
    %c0_78 = arith.constant 0 : index
    %c0_79 = arith.constant 0 : index
    %354 = vector.load %arg10[%353, %c0_78, %c0_79] : memref<8x8x32xf32, #tpu.memory_space<vmem>>, vector<1x8x32xf32>
    %355 = vector.shape_cast %354 : vector<1x8x32xf32> to vector<8x32xf32>
    %356 = vector.shape_cast %352 : vector<8x32xf32> to vector<1x8x32xf32>
    tpu.vector_store %arg10[%353, %c0_78, %c0_79], %356 {strides = array<i32>} : memref<8x8x32xf32, #tpu.memory_space<vmem>>, vector<1x8x32xf32>,
    %c8_i32 = arith.constant 8 : i32
    %357 = tpu.concatenate %333, %352 in 0 : vector<8x32xf32>, vector<8x32xf32> -> vector<16x32xf32>
    %358 = tpu.concatenate %331, %350 in 0 : vector<8x32xf32>, vector<8x32xf32> -> vector<16x32xf32>
    %c0_80 = arith.constant 0 : index
    %c0_81 = arith.constant 0 : index
    %359 = vector.load %arg6[%c0_80, %c0_81] : memref<32x16xf32, #tpu.memory_space<vmem>>, vector<32x16xf32>
    %cst_82 = arith.constant dense<0.000000e+00> : vector<16x16xf32>
    %360 = tpu.matmul %357, %359, %cst_82 {dimension_numbers = #tpu.dot_dimension_numbers<[1], [0], [0], [1], [0, 0, 1, 1], [], []>} : vector<16x32xf32>, vector<32x16xf32>, vector<16x16xf32> -> vector<16x16xf32>
    %c0_83 = arith.constant 0 : index
    %c0_84 = arith.constant 0 : index
    %361 = vector.load %arg7[%c0_83, %c0_84] : memref<1x16xf32, #tpu.memory_space<vmem>>, vector<1x16xf32>
    %362 = vector.broadcast %361 : vector<1x16xf32> to vector<16x16xf32>
    %363 = arith.addf %360, %362 : vector<16x16xf32>
    %364 = vector.shape_cast %363 : vector<16x16xf32> to vector<2x8x16xf32>
    %c0_85 = arith.constant 0 : index
    %c0_86 = arith.constant 0 : index
    %c0_87 = arith.constant 0 : index
    %365 = vector.load %arg11[%c0_85, %c0_86, %c0_87] : memref<2x8x16xf32, #tpu.memory_space<vmem>>, vector<2x8x16xf32>
    tpu.vector_store %arg11[%c0_85, %c0_86, %c0_87], %364 {strides = array<i32>} : memref<2x8x16xf32, #tpu.memory_space<vmem>>, vector<2x8x16xf32>,
    %c0_88 = arith.constant 0 : index
    %c0_89 = arith.constant 0 : index
    %366 = vector.load %arg8[%c0_88, %c0_89] : memref<32x16xf32, #tpu.memory_space<vmem>>, vector<32x16xf32>
    %cst_90 = arith.constant dense<0.000000e+00> : vector<16x16xf32>
    %367 = tpu.matmul %358, %366, %cst_90 {dimension_numbers = #tpu.dot_dimension_numbers<[1], [0], [0], [1], [0, 0, 1, 1], [], []>} : vector<16x32xf32>, vector<32x16xf32>, vector<16x16xf32> -> vector<16x16xf32>
    %c0_91 = arith.constant 0 : index
    %c0_92 = arith.constant 0 : index
    %368 = vector.load %arg9[%c0_91, %c0_92] : memref<1x16xf32, #tpu.memory_space<vmem>>, vector<1x16xf32>
    %369 = vector.broadcast %368 : vector<1x16xf32> to vector<16x16xf32>
    %370 = arith.addf %367, %369 : vector<16x16xf32>
    %371 = vector.shape_cast %370 : vector<16x16xf32> to vector<2x8x16xf32>
    %c0_93 = arith.constant 0 : index
    %c0_94 = arith.constant 0 : index
    %c0_95 = arith.constant 0 : index
    %372 = vector.load %arg12[%c0_93, %c0_94, %c0_95] : memref<2x8x16xf32, #tpu.memory_space<vmem>>, vector<2x8x16xf32>
    tpu.vector_store %arg12[%c0_93, %c0_94, %c0_95], %371 {strides = array<i32>} : memref<2x8x16xf32, #tpu.memory_space<vmem>>, vector<2x8x16xf32>,
    return
  }
}

</mosaic_0001>

<llo_original>
// kernel: encoder_rnn_attention_forward.1
$region0: #{encoder_rnn_attention_forward.1}
  #allocation0 [shape = 'u32[]', space=smem, size = 0x4, offset = 0x4, fixed_abs, tag = 'smem constant byte address 0x4 - core index']
  #allocation1 [shape = 'u32[144,128]{1,0:T(1,128)}', space=vmem, size = 0x12000, scoped, tag = 'internal scratch']
  #allocation2 [shape = 'f32[8,8,128]{2,1,0:T(8,128)}', space=vmem, size = 0x8000, scoped, tag = 'scratch operand']
  %s0 = inlined_call_operand.vmem [shape: f32[8,8,16], index: 0, kind: input, shape index: {}]
  %s1 = inlined_call_operand.vmem [shape: f32[16,128], index: 1, kind: input, shape index: {}]
  %s2 = inlined_call_operand.vmem [shape: f32[32,128], index: 2, kind: input, shape index: {}]
  %s3 = inlined_call_operand.vmem [shape: f32[1,128], index: 3, kind: input, shape index: {}]
  %s4 = inlined_call_operand.vmem [shape: f32[64,128], index: 4, kind: input, shape index: {}]
  %s5 = inlined_call_operand.vmem [shape: f32[1,128], index: 5, kind: input, shape index: {}]
  %s6 = inlined_call_operand.vmem [shape: f32[32,16], index: 6, kind: input, shape index: {}]
  %s7 = inlined_call_operand.vmem [shape: f32[1,16], index: 7, kind: input, shape index: {}]
  %s8 = inlined_call_operand.vmem [shape: f32[32,16], index: 8, kind: input, shape index: {}]
  %s9 = inlined_call_operand.vmem [shape: f32[1,16], index: 9, kind: input, shape index: {}]
  %s10 = inlined_call_operand.vmem [shape: f32[8,8,32], index: 10, kind: output, shape index: {0}]
  %s11 = inlined_call_operand.hbm [shape: f32[2,8,16], index: 11, kind: output, shape index: {1}]
  %s12 = inlined_call_operand.hbm [shape: f32[2,8,16], index: 12, kind: output, shape index: {2}]
  %13 = xla_tuple %s10, %s11, %s12
  %s14 = sld [smem:[#allocation0]]
  $region66: #{encoder_rnn_attention_forward.1} parent=0
    _
  %s16 = ssub.s32 1, %s14
  %s17 = scalar_select 0, %s16, %s14
  $region1: #{encoder_rnn_attention_forward.1} parent=0
    #allocation3 [shape = 'u8[8192]{0}', space=vmem, size = 0x2000, scoped, tag = 'output window, operand 1, single buffered']
    #allocation4 [shape = 's32[1]{0}', space=sflag, size = 0x4, scoped, tag = 'scoped memory for encoder_rnn_attention_forward.1']
    #allocation5 [shape = 'u8[8192]{0}', space=vmem, size = 0x2000, scoped, tag = 'output window, operand 2, single buffered']
    #allocation6 [shape = 's32[1]{0}', space=sflag, size = 0x4, scoped, tag = 'scoped memory for encoder_rnn_attention_forward.1']
    %18 = vsyncpa [#allocation4], 0
    %19 = vsyncpa [#allocation6], 0
    // Predicated region
    $region2: #{encoder_rnn_attention_forward.1} parent=1 // pred_check
      _
    $region3: #{encoder_rnn_attention_forward.1} parent=1 // pred_check_branch
      %21 = sbr.rel (0) target = $region5
    $region4: #{encoder_rnn_attention_forward.1} parent=1 // pred_region
      _
    $region5: #{encoder_rnn_attention_forward.1} parent=1 // pred_fallthru
      _
    // Predicated region
    $region6: #{encoder_rnn_attention_forward.1} parent=1 // pred_check
      _
    $region7: #{encoder_rnn_attention_forward.1} parent=1 // pred_check_branch
      %23 = sbr.rel (0) target = $region9
    $region8: #{encoder_rnn_attention_forward.1} parent=1 // pred_region
      _
    $region9: #{encoder_rnn_attention_forward.1} parent=1 // pred_fallthru
      _
    // Predicated region
    $region10: #{encoder_rnn_attention_forward.1} parent=1 // pred_check
      _
    $region11: #{encoder_rnn_attention_forward.1} parent=1 // pred_check_branch
      %25 = sbr.rel (0) target = $region13
    $region12: #{encoder_rnn_attention_forward.1} parent=1 // pred_region
      _
    $region13: #{encoder_rnn_attention_forward.1} parent=1 // pred_fallthru
      _
    // Predicated region
    $region14: #{encoder_rnn_attention_forward.1} parent=1 // pred_check
      _
    $region15: #{encoder_rnn_attention_forward.1} parent=1 // pred_check_branch
      %27 = sbr.rel (0) target = $region17
    $region16: #{encoder_rnn_attention_forward.1} parent=1 // pred_region
      _
    $region17: #{encoder_rnn_attention_forward.1} parent=1 // pred_fallthru
      _
    // Predicated region
    $region18: #{encoder_rnn_attention_forward.1} parent=1 // pred_check
      _
    $region19: #{encoder_rnn_attention_forward.1} parent=1 // pred_check_branch
      %29 = sbr.rel (0) target = $region21
    $region20: #{encoder_rnn_attention_forward.1} parent=1 // pred_region
      _
    $region21: #{encoder_rnn_attention_forward.1} parent=1 // pred_fallthru
      _
    // Predicated region
    $region22: #{encoder_rnn_attention_forward.1} parent=1 // pred_check
      _
    $region23: #{encoder_rnn_attention_forward.1} parent=1 // pred_check_branch
      %31 = sbr.rel (0) target = $region25
    $region24: #{encoder_rnn_attention_forward.1} parent=1 // pred_region
      _
    $region25: #{encoder_rnn_attention_forward.1} parent=1 // pred_fallthru
      _
    // Predicated region
    $region26: #{encoder_rnn_attention_forward.1} parent=1 // pred_check
      _
    $region27: #{encoder_rnn_attention_forward.1} parent=1 // pred_check_branch
      %33 = sbr.rel (0) target = $region29
    $region28: #{encoder_rnn_attention_forward.1} parent=1 // pred_region
      _
    $region29: #{encoder_rnn_attention_forward.1} parent=1 // pred_fallthru
      _
    // Predicated region
    $region30: #{encoder_rnn_attention_forward.1} parent=1 // pred_check
      _
    $region31: #{encoder_rnn_attention_forward.1} parent=1 // pred_check_branch
      %35 = sbr.rel (0) target = $region33
    $region32: #{encoder_rnn_attention_forward.1} parent=1 // pred_region
      _
    $region33: #{encoder_rnn_attention_forward.1} parent=1 // pred_fallthru
      _
    // Predicated region
    $region34: #{encoder_rnn_attention_forward.1} parent=1 // pred_check
      _
    $region35: #{encoder_rnn_attention_forward.1} parent=1 // pred_check_branch
      %37 = sbr.rel (0) target = $region37
    $region36: #{encoder_rnn_attention_forward.1} parent=1 // pred_region
      _
    $region37: #{encoder_rnn_attention_forward.1} parent=1 // pred_fallthru
      _
    // Predicated region
    $region38: #{encoder_rnn_attention_forward.1} parent=1 // pred_check
      _
    $region39: #{encoder_rnn_attention_forward.1} parent=1 // pred_check_branch
      %39 = sbr.rel (0) target = $region41
    $region40: #{encoder_rnn_attention_forward.1} parent=1 // pred_region
      _
    $region41: #{encoder_rnn_attention_forward.1} parent=1 // pred_fallthru
      _
    %v40 = vld [vmem:[%s0] sm:$0xff]
    %v41 = vld [vmem:[%s0 + $0x8] sm:$0xff]
    %v42 = vld [vmem:[%s0 + $0x10] sm:$0xff]
    %v43 = vld [vmem:[%s0 + $0x18] sm:$0xff]
    %v44 = vld [vmem:[%s0 + $0x20] sm:$0xff]
    %v45 = vld [vmem:[%s0 + $0x28] sm:$0xff]
    %v46 = vld [vmem:[%s0 + $0x30] sm:$0xff]
    %v47 = vld [vmem:[%s0 + $0x38] sm:$0xff]
    %v48 = vld [vmem:[%s1] sm:$0xff]
    %v49 = vld [vmem:[%s1 + $0x8] sm:$0xff]
    %v50 = vld [vmem:[%s3] sm:$0x1]
    %v52 = vlaneseq
    %v53 = vshrl.u32 %v52, 7
    %v54 = vsub.s32 0, %v53
    %v55 = vrot.slane %v50, %v54
    %vm57 = vcmask 130048
    %v59 = vsel %vm57, %v40, 0
    %v62 = vsel %vm57, %v41, 0
    %v65 = vsel %vm57, %v42, 0
    %v68 = vsel %vm57, %v43, 0
    %v71 = vsel %vm57, %v44, 0
    %v74 = vsel %vm57, %v45, 0
    %v77 = vsel %vm57, %v46, 0
    %v80 = vsel %vm57, %v47, 0
    %82 = vmatprep.subr.mxu0 0.0
    %83 = vmatpush1.msra.mxu0 %v48
    %84 = vmatprep.subr.mxu0 0.0
    %85 = vmatpush1.msra.mxu0 %v49
    %86 = vmatprep.subr.mxu0 0.0
    %87 = vmatpush1.msra.mxu0 0.0
    %88 = vmatprep.subr.mxu0 0.0
    %89 = vmatpush1.msra.mxu0 0.0
    %90 = vmatprep.subr.mxu0 0.0
    %91 = vmatpush1.msra.mxu0 0.0
    %92 = vmatprep.subr.mxu0 0.0
    %93 = vmatpush1.msra.mxu0 0.0
    %94 = vmatprep.subr.mxu0 0.0
    %95 = vmatpush1.msra.mxu0 0.0
    %96 = vmatprep.subr.mxu0 0.0
    %97 = vmatpush1.msra.mxu0 0.0
    %98 = vmatprep.subr.mxu0 0.0
    %99 = vmatpush1.msra.mxu0 0.0
    %100 = vmatprep.subr.mxu0 0.0
    %101 = vmatpush1.msra.mxu0 0.0
    %102 = vmatprep.subr.mxu0 0.0
    %103 = vmatpush1.msra.mxu0 0.0
    %104 = vmatprep.subr.mxu0 0.0
    %105 = vmatpush1.msra.mxu0 0.0
    %106 = vmatprep.subr.mxu0 0.0
    %107 = vmatpush1.msra.mxu0 0.0
    %108 = vmatprep.subr.mxu0 0.0
    %109 = vmatpush1.msra.mxu0 0.0
    %110 = vmatprep.subr.mxu0 0.0
    %111 = vmatpush1.msra.mxu0 0.0
    %112 = vmatprep.subr.mxu0 0.0
    %113 = vmatpush1.msra.mxu0 0.0
    %114 = vmatprep.subr.mxu0 0.0
    %115 = vmatpush1.msra.mxu0 0.0
    %116 = vmatprep.subr.mxu0 0.0
    %117 = vmatpush1.msra.mxu0 0.0
    %118 = vmatprep.subr.mxu0 0.0
    %119 = vmatpush1.msra.mxu0 0.0
    %120 = vmatprep.subr.mxu0 0.0
    %121 = vmatpush1.msra.mxu0 0.0
    %122 = vmatprep.subr.mxu0 0.0
    %123 = vmatpush1.msra.mxu0 0.0
    %124 = vmatprep.subr.mxu0 0.0
    %125 = vmatpush1.msra.mxu0 0.0
    %126 = vmatprep.subr.mxu0 0.0
    %127 = vmatpush1.msra.mxu0 0.0
    %128 = vmatprep.subr.mxu0 0.0
    %129 = vmatpush1.msra.mxu0 0.0
    %130 = vmatprep.subr.mxu0 0.0
    %131 = vmatpush1.msra.mxu0 0.0
    %132 = vmatprep.subr.mxu0 0.0
    %133 = vmatpush1.msra.mxu0 0.0
    %134 = vmatprep.subr.mxu0 0.0
    %135 = vmatpush1.msra.mxu0 0.0
    %136 = vmatprep.subr.mxu0 0.0
    %137 = vmatpush1.msra.mxu0 0.0
    %138 = vmatprep.subr.mxu0 0.0
    %139 = vmatpush1.msra.mxu0 0.0
    %140 = vmatprep.subr.mxu0 0.0
    %141 = vmatpush1.msra.mxu0 0.0
    %142 = vmatprep.subr.mxu0 0.0
    %143 = vmatpush1.msra.mxu0 0.0
    %144 = vmatprep.subr.mxu0 0.0
    %145 = vmatpush1.msra.mxu0 0.0
    %146 = vmatprep.mubr.f32.mxu0 0.0
    %147 = vmatmul.mubr.f32.gmra.mrb[0].mxu0 %v59
    %v148 = vpop.f32.mrb[0].mxu0
    %v149 = vadd.f32 %v55, %v148
    %v150 = vpop.f32.mrb[0].mxu0
    %151 = vmatprep.mubr.f32.mxu0 0.0
    %152 = vmatmul.mubr.f32.gmra.mrb[0].mxu0 %v62
    %v153 = vpop.f32.mrb[0].mxu0
    %v154 = vadd.f32 %v55, %v153
    %v155 = vpop.f32.mrb[0].mxu0
    %156 = vmatprep.mubr.f32.mxu0 0.0
    %157 = vmatmul.mubr.f32.gmra.mrb[0].mxu0 %v65
    %v158 = vpop.f32.mrb[0].mxu0
    %v159 = vadd.f32 %v55, %v158
    %v160 = vpop.f32.mrb[0].mxu0
    %161 = vmatprep.mubr.f32.mxu0 0.0
    %162 = vmatmul.mubr.f32.gmra.mrb[0].mxu0 %v68
    %v163 = vpop.f32.mrb[0].mxu0
    %v164 = vadd.f32 %v55, %v163
    %v165 = vpop.f32.mrb[0].mxu0
    %166 = vmatprep.mubr.f32.mxu0 0.0
    %167 = vmatmul.mubr.f32.gmra.mrb[0].mxu0 %v71
    %v168 = vpop.f32.mrb[0].mxu0
    %v169 = vadd.f32 %v55, %v168
    %v170 = vpop.f32.mrb[0].mxu0
    %171 = vmatprep.mubr.f32.mxu0 0.0
    %172 = vmatmul.mubr.f32.gmra.mrb[0].mxu0 %v74
    %v173 = vpop.f32.mrb[0].mxu0
    %v174 = vadd.f32 %v55, %v173
    %v175 = vpop.f32.mrb[0].mxu0
    %176 = vmatprep.mubr.f32.mxu0 0.0
    %177 = vmatmul.mubr.f32.gmra.mrb[0].mxu0 %v77
    %v178 = vpop.f32.mrb[0].mxu0
    %v179 = vadd.f32 %v55, %v178
    %v180 = vpop.f32.mrb[0].mxu0
    %181 = vmatprep.mubr.f32.mxu0 0.0
    %182 = vmatmul.mubr.f32.gmra.mrb[0].mxu0 %v80
    %v183 = vpop.f32.mrb[0].mxu0
    %v184 = vadd.f32 %v55, %v183
    %v185 = vpop.f32.mrb[0].mxu0
    %186 = vdwg.mxu0
    %187 = vst [vmem:[#allocation2] sm:$0xff] %v149
    %188 = vst [vmem:[#allocation2 + $0x8] sm:$0xff] %v154
    %189 = vst [vmem:[#allocation2 + $0x10] sm:$0xff] %v159
    %190 = vst [vmem:[#allocation2 + $0x18] sm:$0xff] %v164
    %191 = vst [vmem:[#allocation2 + $0x20] sm:$0xff] %v169
    %192 = vst [vmem:[#allocation2 + $0x28] sm:$0xff] %v174
    %193 = vst [vmem:[#allocation2 + $0x30] sm:$0xff] %v179
    %194 = vst [vmem:[#allocation2 + $0x38] sm:$0xff] %v184
    %v195 = vld [vmem:[%s2] sm:$0xff]
    %v196 = vld [vmem:[%s2 + $0x8] sm:$0xff]
    %v197 = vld [vmem:[%s2 + $0x10] sm:$0xff]
    %v198 = vld [vmem:[%s2 + $0x18] sm:$0xff]
    %v199 = vld [vmem:[%s4] sm:$0xff]
    %v200 = vld [vmem:[%s4 + $0x8] sm:$0xff]
    %v201 = vld [vmem:[%s4 + $0x10] sm:$0xff]
    %v202 = vld [vmem:[%s4 + $0x18] sm:$0xff]
    %v203 = vld [vmem:[%s4 + $0x20] sm:$0xff]
    %v204 = vld [vmem:[%s4 + $0x28] sm:$0xff]
    %v205 = vld [vmem:[%s4 + $0x30] sm:$0xff]
    %v206 = vld [vmem:[%s4 + $0x38] sm:$0xff]
    %v207 = vld [vmem:[%s5] sm:$0x1]
    %v208 = vld [vmem:[#allocation2] sm:$0xff]
    %vm209 = vcmask 261120
    %v211 = vsel %vm209, 0.0, 0
    %213 = vmatprep.subr.mxu0 0.0
    %214 = vmatpush1.msra.mxu0 %v195
    %215 = vmatprep.subr.mxu0 0.0
    %216 = vmatpush1.msra.mxu0 %v196
    %217 = vmatprep.subr.mxu0 0.0
    %218 = vmatpush1.msra.mxu0 %v197
    %219 = vmatprep.subr.mxu0 0.0
    %220 = vmatpush1.msra.mxu0 %v198
    %221 = vmatprep.subr.mxu0 0.0
    %222 = vmatpush1.msra.mxu0 0.0
    %223 = vmatprep.subr.mxu0 0.0
    %224 = vmatpush1.msra.mxu0 0.0
    %225 = vmatprep.subr.mxu0 0.0
    %226 = vmatpush1.msra.mxu0 0.0
    %227 = vmatprep.subr.mxu0 0.0
    %228 = vmatpush1.msra.mxu0 0.0
    %229 = vmatprep.subr.mxu0 0.0
    %230 = vmatpush1.msra.mxu0 0.0
    %231 = vmatprep.subr.mxu0 0.0
    %232 = vmatpush1.msra.mxu0 0.0
    %233 = vmatprep.subr.mxu0 0.0
    %234 = vmatpush1.msra.mxu0 0.0
    %235 = vmatprep.subr.mxu0 0.0
    %236 = vmatpush1.msra.mxu0 0.0
    %237 = vmatprep.subr.mxu0 0.0
    %238 = vmatpush1.msra.mxu0 0.0
    %239 = vmatprep.subr.mxu0 0.0
    %240 = vmatpush1.msra.mxu0 0.0
    %241 = vmatprep.subr.mxu0 0.0
    %242 = vmatpush1.msra.mxu0 0.0
    %243 = vmatprep.subr.mxu0 0.0
    %244 = vmatpush1.msra.mxu0 0.0
    %245 = vmatprep.subr.mxu0 0.0
    %246 = vmatpush1.msra.mxu0 0.0
    %247 = vmatprep.subr.mxu0 0.0
    %248 = vmatpush1.msra.mxu0 0.0
    %249 = vmatprep.subr.mxu0 0.0
    %250 = vmatpush1.msra.mxu0 0.0
    %251 = vmatprep.subr.mxu0 0.0
    %252 = vmatpush1.msra.mxu0 0.0
    %253 = vmatprep.subr.mxu0 0.0
    %254 = vmatpush1.msra.mxu0 0.0
    %255 = vmatprep.subr.mxu0 0.0
    %256 = vmatpush1.msra.mxu0 0.0
    %257 = vmatprep.subr.mxu0 0.0
    %258 = vmatpush1.msra.mxu0 0.0
    %259 = vmatprep.subr.mxu0 0.0
    %260 = vmatpush1.msra.mxu0 0.0
    %261 = vmatprep.subr.mxu0 0.0
    %262 = vmatpush1.msra.mxu0 0.0
    %263 = vmatprep.subr.mxu0 0.0
    %264 = vmatpush1.msra.mxu0 0.0
    %265 = vmatprep.subr.mxu0 0.0
    %266 = vmatpush1.msra.mxu0 0.0
    %267 = vmatprep.subr.mxu0 0.0
    %268 = vmatpush1.msra.mxu0 0.0
    %269 = vmatprep.subr.mxu0 0.0
    %270 = vmatpush1.msra.mxu0 0.0
    %271 = vmatprep.subr.mxu0 0.0
    %272 = vmatpush1.msra.mxu0 0.0
    %273 = vmatprep.subr.mxu0 0.0
    %274 = vmatpush1.msra.mxu0 0.0
    %275 = vmatprep.subr.mxu0 0.0
    %276 = vmatpush1.msra.mxu0 0.0
    %277 = vmatprep.mubr.f32.mxu0 0.0
    %278 = vmatmul.mubr.f32.gmra.mrb[0].mxu0 %v211
    %v279 = vpop.f32.mrb[0].mxu0
    %v280 = vadd.f32 0.0, %v279
    %v281 = vpop.f32.mrb[0].mxu0
    %282 = vdwg.mxu0
    %v283 = vadd.f32 %v208, %v280
    %v284 = vxor.u32 %v283, 2147483648
    %v285 = vmul.f32 %v284, 1.442695
    %v286 = vpow.pop %v285
    %v287 = vadd.f32 %v286, 1.0
    %v288 = vrcp.pop %v287
    %v289 = vmul.f32 1.0, %v288
    %v290 = vtanh.pop %v283
    %v291 = vmul.f32 %v289, 0.0
    %293 = vrot.lane.b32.xlu0 %v290, 64
    %v294 = vpop.permute.xlu0 %293
    %v296 = vmul.f32 %v289, %v294
    %298 = vrot.lane.b32.xlu0 %v296, 32
    %v299 = vpop.permute.xlu0 %298
    %v301 = vadd.f32 %v291, %v299
    %v302 = vtanh.pop %v301
    %304 = vrot.lane.b32.xlu0 %v302, 64
    %v305 = vpop.permute.xlu0 %304
    %v307 = vmul.f32 %v289, %v305
    %309 = vrot.lane.b32.xlu0 %v307, 32
    %v310 = vpop.permute.xlu0 %309
    %v312 = vsel %vm209, %v310, 0.0
    %v314 = vlaneseq
    %v315 = vshrl.u32 %v314, 7
    %v316 = vsub.s32 0, %v315
    %v317 = vrot.slane %v207, %v316
    %vm319 = vcmask 523264
    %v321 = vsel %vm319, %v312, 0
    %323 = vmatprep.subr.mxu0 0.0
    %324 = vmatpush1.msra.mxu0 %v199
    %325 = vmatprep.subr.mxu0 0.0
    %326 = vmatpush1.msra.mxu0 %v200
    %327 = vmatprep.subr.mxu0 0.0
    %328 = vmatpush1.msra.mxu0 %v201
    %329 = vmatprep.subr.mxu0 0.0
    %330 = vmatpush1.msra.mxu0 %v202
    %331 = vmatprep.subr.mxu0 0.0
    %332 = vmatpush1.msra.mxu0 %v203
    %333 = vmatprep.subr.mxu0 0.0
    %334 = vmatpush1.msra.mxu0 %v204
    %335 = vmatprep.subr.mxu0 0.0
    %336 = vmatpush1.msra.mxu0 %v205
    %337 = vmatprep.subr.mxu0 0.0
    %338 = vmatpush1.msra.mxu0 %v206
    %339 = vmatprep.subr.mxu0 0.0
    %340 = vmatpush1.msra.mxu0 0.0
    %341 = vmatprep.subr.mxu0 0.0
    %342 = vmatpush1.msra.mxu0 0.0
    %343 = vmatprep.subr.mxu0 0.0
    %344 = vmatpush1.msra.mxu0 0.0
    %345 = vmatprep.subr.mxu0 0.0
    %346 = vmatpush1.msra.mxu0 0.0
    %347 = vmatprep.subr.mxu0 0.0
    %348 = vmatpush1.msra.mxu0 0.0
    %349 = vmatprep.subr.mxu0 0.0
    %350 = vmatpush1.msra.mxu0 0.0
    %351 = vmatprep.subr.mxu0 0.0
    %352 = vmatpush1.msra.mxu0 0.0
    %353 = vmatprep.subr.mxu0 0.0
    %354 = vmatpush1.msra.mxu0 0.0
    %355 = vmatprep.subr.mxu0 0.0
    %356 = vmatpush1.msra.mxu0 0.0
    %357 = vmatprep.subr.mxu0 0.0
    %358 = vmatpush1.msra.mxu0 0.0
    %359 = vmatprep.subr.mxu0 0.0
    %360 = vmatpush1.msra.mxu0 0.0
    %361 = vmatprep.subr.mxu0 0.0
    %362 = vmatpush1.msra.mxu0 0.0
    %363 = vmatprep.subr.mxu0 0.0
    %364 = vmatpush1.msra.mxu0 0.0
    %365 = vmatprep.subr.mxu0 0.0
    %366 = vmatpush1.msra.mxu0 0.0
    %367 = vmatprep.subr.mxu0 0.0
    %368 = vmatpush1.msra.mxu0 0.0
    %369 = vmatprep.subr.mxu0 0.0
    %370 = vmatpush1.msra.mxu0 0.0
    %371 = vmatprep.subr.mxu0 0.0
    %372 = vmatpush1.msra.mxu0 0.0
    %373 = vmatprep.subr.mxu0 0.0
    %374 = vmatpush1.msra.mxu0 0.0
    %375 = vmatprep.subr.mxu0 0.0
    %376 = vmatpush1.msra.mxu0 0.0
    %377 = vmatprep.subr.mxu0 0.0
    %378 = vmatpush1.msra.mxu0 0.0
    %379 = vmatprep.subr.mxu0 0.0
    %380 = vmatpush1.msra.mxu0 0.0
    %381 = vmatprep.subr.mxu0 0.0
    %382 = vmatpush1.msra.mxu0 0.0
    %383 = vmatprep.subr.mxu0 0.0
    %384 = vmatpush1.msra.mxu0 0.0
    %385 = vmatprep.subr.mxu0 0.0
    %386 = vmatpush1.msra.mxu0 0.0
    %387 = vmatprep.mubr.f32.mxu0 0.0
    %388 = vmatmul.mubr.f32.gmra.mrb[0].mxu0 %v321
    %v389 = vpop.f32.mrb[0].mxu0
    %v390 = vadd.f32 %v317, %v389
    %v391 = vpop.f32.mrb[0].mxu0
    %392 = vdwg.mxu0
    %v393 = vxor.u32 %v390, 2147483648
    %v394 = vmul.f32 %v393, 1.442695
    %v395 = vpow.pop %v394
    %v396 = vadd.f32 %v395, 1.0
    %v397 = vrcp.pop %v396
    %v398 = vmul.f32 1.0, %v397
    %v399 = vtanh.pop %v390
    %v400 = vmul.f32 %v398, 0.0
    %402 = vrot.lane.b32.xlu0 %v399, 64
    %v403 = vpop.permute.xlu0 %402
    %v405 = vmul.f32 %v398, %v403
    %407 = vrot.lane.b32.xlu0 %v405, 32
    %v408 = vpop.permute.xlu0 %407
    %v410 = vadd.f32 %v400, %v408
    %v411 = vtanh.pop %v410
    %413 = vrot.lane.b32.xlu0 %v411, 64
    %v414 = vpop.permute.xlu0 %413
    %v416 = vmul.f32 %v398, %v414
    %418 = vrot.lane.b32.xlu0 %v416, 32
    %v419 = vpop.permute.xlu0 %418
    %421 = vst.msk [vmem:[%s10] sm:$0xff] %vm209, %v419
    %s422 = scalar_lea.vmem [#allocation2], 8
    %v423 = vld [vmem:[%s422] sm:$0xff]
    %v424 = vsel %vm209, %v310, 0
    %426 = vmatprep.subr.mxu0 0.0
    %427 = vmatpush1.msra.mxu0 %v195
    %428 = vmatprep.subr.mxu0 0.0
    %429 = vmatpush1.msra.mxu0 %v196
    %430 = vmatprep.subr.mxu0 0.0
    %431 = vmatpush1.msra.mxu0 %v197
    %432 = vmatprep.subr.mxu0 0.0
    %433 = vmatpush1.msra.mxu0 %v198
    %434 = vmatprep.subr.mxu0 0.0
    %435 = vmatpush1.msra.mxu0 0.0
    %436 = vmatprep.subr.mxu0 0.0
    %437 = vmatpush1.msra.mxu0 0.0
    %438 = vmatprep.subr.mxu0 0.0
    %439 = vmatpush1.msra.mxu0 0.0
    %440 = vmatprep.subr.mxu0 0.0
    %441 = vmatpush1.msra.mxu0 0.0
    %442 = vmatprep.subr.mxu0 0.0
    %443 = vmatpush1.msra.mxu0 0.0
    %444 = vmatprep.subr.mxu0 0.0
    %445 = vmatpush1.msra.mxu0 0.0
    %446 = vmatprep.subr.mxu0 0.0
    %447 = vmatpush1.msra.mxu0 0.0
    %448 = vmatprep.subr.mxu0 0.0
    %449 = vmatpush1.msra.mxu0 0.0
    %450 = vmatprep.subr.mxu0 0.0
    %451 = vmatpush1.msra.mxu0 0.0
    %452 = vmatprep.subr.mxu0 0.0
    %453 = vmatpush1.msra.mxu0 0.0
    %454 = vmatprep.subr.mxu0 0.0
    %455 = vmatpush1.msra.mxu0 0.0
    %456 = vmatprep.subr.mxu0 0.0
    %457 = vmatpush1.msra.mxu0 0.0
    %458 = vmatprep.subr.mxu0 0.0
    %459 = vmatpush1.msra.mxu0 0.0
    %460 = vmatprep.subr.mxu0 0.0
    %461 = vmatpush1.msra.mxu0 0.0
    %462 = vmatprep.subr.mxu0 0.0
    %463 = vmatpush1.msra.mxu0 0.0
    %464 = vmatprep.subr.mxu0 0.0
    %465 = vmatpush1.msra.mxu0 0.0
    %466 = vmatprep.subr.mxu0 0.0
    %467 = vmatpush1.msra.mxu0 0.0
    %468 = vmatprep.subr.mxu0 0.0
    %469 = vmatpush1.msra.mxu0 0.0
    %470 = vmatprep.subr.mxu0 0.0
    %471 = vmatpush1.msra.mxu0 0.0
    %472 = vmatprep.subr.mxu0 0.0
    %473 = vmatpush1.msra.mxu0 0.0
    %474 = vmatprep.subr.mxu0 0.0
    %475 = vmatpush1.msra.mxu0 0.0
    %476 = vmatprep.subr.mxu0 0.0
    %477 = vmatpush1.msra.mxu0 0.0
    %478 = vmatprep.subr.mxu0 0.0
    %479 = vmatpush1.msra.mxu0 0.0
    %480 = vmatprep.subr.mxu0 0.0
    %481 = vmatpush1.msra.mxu0 0.0
    %482 = vmatprep.subr.mxu0 0.0
    %483 = vmatpush1.msra.mxu0 0.0
    %484 = vmatprep.subr.mxu0 0.0
    %485 = vmatpush1.msra.mxu0 0.0
    %486 = vmatprep.subr.mxu0 0.0
    %487 = vmatpush1.msra.mxu0 0.0
    %488 = vmatprep.subr.mxu0 0.0
    %489 = vmatpush1.msra.mxu0 0.0
    %490 = vmatprep.mubr.f32.mxu0 0.0
    %491 = vmatmul.mubr.f32.gmra.mrb[0].mxu0 %v424
    %v492 = vpop.f32.mrb[0].mxu0
    %v493 = vadd.f32 0.0, %v492
    %v494 = vpop.f32.mrb[0].mxu0
    %495 = vdwg.mxu0
    %v496 = vadd.f32 %v423, %v493
    %v497 = vxor.u32 %v496, 2147483648
    %v498 = vmul.f32 %v497, 1.442695
    %v499 = vpow.pop %v498
    %v500 = vadd.f32 %v499, 1.0
    %v501 = vrcp.pop %v500
    %v502 = vmul.f32 1.0, %v501
    %v503 = vtanh.pop %v496
    %v504 = vmul.f32 %v502, %v301
    %506 = vrot.lane.b32.xlu0 %v503, 64
    %v507 = vpop.permute.xlu0 %506
    %v509 = vmul.f32 %v502, %v507
    %511 = vrot.lane.b32.xlu0 %v509, 32
    %v512 = vpop.permute.xlu0 %511
    %v514 = vadd.f32 %v504, %v512
    %v515 = vtanh.pop %v514
    %517 = vrot.lane.b32.xlu0 %v515, 64
    %v518 = vpop.permute.xlu0 %517
    %v520 = vmul.f32 %v502, %v518
    %522 = vrot.lane.b32.xlu0 %v520, 32
    %v523 = vpop.permute.xlu0 %522
    %525 = vrot.lane.b32.xlu0 %v416, 64
    %v526 = vpop.permute.xlu0 %525
    %v528 = vsel %vm209, %v523, %v526
    %v530 = vsel %vm319, %v528, 0
    %532 = vmatprep.subr.mxu0 0.0
    %533 = vmatpush1.msra.mxu0 %v199
    %534 = vmatprep.subr.mxu0 0.0
    %535 = vmatpush1.msra.mxu0 %v200
    %536 = vmatprep.subr.mxu0 0.0
    %537 = vmatpush1.msra.mxu0 %v201
    %538 = vmatprep.subr.mxu0 0.0
    %539 = vmatpush1.msra.mxu0 %v202
    %540 = vmatprep.subr.mxu0 0.0
    %541 = vmatpush1.msra.mxu0 %v203
    %542 = vmatprep.subr.mxu0 0.0
    %543 = vmatpush1.msra.mxu0 %v204
    %544 = vmatprep.subr.mxu0 0.0
    %545 = vmatpush1.msra.mxu0 %v205
    %546 = vmatprep.subr.mxu0 0.0
    %547 = vmatpush1.msra.mxu0 %v206
    %548 = vmatprep.subr.mxu0 0.0
    %549 = vmatpush1.msra.mxu0 0.0
    %550 = vmatprep.subr.mxu0 0.0
    %551 = vmatpush1.msra.mxu0 0.0
    %552 = vmatprep.subr.mxu0 0.0
    %553 = vmatpush1.msra.mxu0 0.0
    %554 = vmatprep.subr.mxu0 0.0
    %555 = vmatpush1.msra.mxu0 0.0
    %556 = vmatprep.subr.mxu0 0.0
    %557 = vmatpush1.msra.mxu0 0.0
    %558 = vmatprep.subr.mxu0 0.0
    %559 = vmatpush1.msra.mxu0 0.0
    %560 = vmatprep.subr.mxu0 0.0
    %561 = vmatpush1.msra.mxu0 0.0
    %562 = vmatprep.subr.mxu0 0.0
    %563 = vmatpush1.msra.mxu0 0.0
    %564 = vmatprep.subr.mxu0 0.0
    %565 = vmatpush1.msra.mxu0 0.0
    %566 = vmatprep.subr.mxu0 0.0
    %567 = vmatpush1.msra.mxu0 0.0
    %568 = vmatprep.subr.mxu0 0.0
    %569 = vmatpush1.msra.mxu0 0.0
    %570 = vmatprep.subr.mxu0 0.0
    %571 = vmatpush1.msra.mxu0 0.0
    %572 = vmatprep.subr.mxu0 0.0
    %573 = vmatpush1.msra.mxu0 0.0
    %574 = vmatprep.subr.mxu0 0.0
    %575 = vmatpush1.msra.mxu0 0.0
    %576 = vmatprep.subr.mxu0 0.0
    %577 = vmatpush1.msra.mxu0 0.0
    %578 = vmatprep.subr.mxu0 0.0
    %579 = vmatpush1.msra.mxu0 0.0
    %580 = vmatprep.subr.mxu0 0.0
    %581 = vmatpush1.msra.mxu0 0.0
    %582 = vmatprep.subr.mxu0 0.0
    %583 = vmatpush1.msra.mxu0 0.0
    %584 = vmatprep.subr.mxu0 0.0
    %585 = vmatpush1.msra.mxu0 0.0
    %586 = vmatprep.subr.mxu0 0.0
    %587 = vmatpush1.msra.mxu0 0.0
    %588 = vmatprep.subr.mxu0 0.0
    %589 = vmatpush1.msra.mxu0 0.0
    %590 = vmatprep.subr.mxu0 0.0
    %591 = vmatpush1.msra.mxu0 0.0
    %592 = vmatprep.subr.mxu0 0.0
    %593 = vmatpush1.msra.mxu0 0.0
    %594 = vmatprep.subr.mxu0 0.0
    %595 = vmatpush1.msra.mxu0 0.0
    %596 = vmatprep.mubr.f32.mxu0 0.0
    %597 = vmatmul.mubr.f32.gmra.mrb[0].mxu0 %v530
    %v598 = vpop.f32.mrb[0].mxu0
    %v599 = vadd.f32 %v317, %v598
    %v600 = vpop.f32.mrb[0].mxu0
    %601 = vdwg.mxu0
    %v602 = vxor.u32 %v599, 2147483648
    %v603 = vmul.f32 %v602, 1.442695
    %v604 = vpow.pop %v603
    %v605 = vadd.f32 %v604, 1.0
    %v606 = vrcp.pop %v605
    %v607 = vmul.f32 1.0, %v606
    %v608 = vtanh.pop %v599
    %v609 = vmul.f32 %v607, %v410
    %611 = vrot.lane.b32.xlu0 %v608, 64
    %v612 = vpop.permute.xlu0 %611
    %v614 = vmul.f32 %v607, %v612
    %616 = vrot.lane.b32.xlu0 %v614, 32
    %v617 = vpop.permute.xlu0 %616
    %v619 = vadd.f32 %v609, %v617
    %v620 = vtanh.pop %v619
    %622 = vrot.lane.b32.xlu0 %v620, 64
    %v623 = vpop.permute.xlu0 %622
    %v625 = vmul.f32 %v607, %v623
    %627 = vrot.lane.b32.xlu0 %v625, 32
    %v628 = vpop.permute.xlu0 %627
    %s630 = scalar_lea.vmem %s10, 8
    %631 = vst.msk [vmem:[%s630] sm:$0xff] %vm209, %v628
    %s632 = scalar_lea.vmem [#allocation2], 16
    %v633 = vld [vmem:[%s632] sm:$0xff]
    %v634 = vsel %vm209, %v523, 0
    %636 = vmatprep.subr.mxu0 0.0
    %637 = vmatpush1.msra.mxu0 %v195
    %638 = vmatprep.subr.mxu0 0.0
    %639 = vmatpush1.msra.mxu0 %v196
    %640 = vmatprep.subr.mxu0 0.0
    %641 = vmatpush1.msra.mxu0 %v197
    %642 = vmatprep.subr.mxu0 0.0
    %643 = vmatpush1.msra.mxu0 %v198
    %644 = vmatprep.subr.mxu0 0.0
    %645 = vmatpush1.msra.mxu0 0.0
    %646 = vmatprep.subr.mxu0 0.0
    %647 = vmatpush1.msra.mxu0 0.0
    %648 = vmatprep.subr.mxu0 0.0
    %649 = vmatpush1.msra.mxu0 0.0
    %650 = vmatprep.subr.mxu0 0.0
    %651 = vmatpush1.msra.mxu0 0.0
    %652 = vmatprep.subr.mxu0 0.0
    %653 = vmatpush1.msra.mxu0 0.0
    %654 = vmatprep.subr.mxu0 0.0
    %655 = vmatpush1.msra.mxu0 0.0
    %656 = vmatprep.subr.mxu0 0.0
    %657 = vmatpush1.msra.mxu0 0.0
    %658 = vmatprep.subr.mxu0 0.0
    %659 = vmatpush1.msra.mxu0 0.0
    %660 = vmatprep.subr.mxu0 0.0
    %661 = vmatpush1.msra.mxu0 0.0
    %662 = vmatprep.subr.mxu0 0.0
    %663 = vmatpush1.msra.mxu0 0.0
    %664 = vmatprep.subr.mxu0 0.0
    %665 = vmatpush1.msra.mxu0 0.0
    %666 = vmatprep.subr.mxu0 0.0
    %667 = vmatpush1.msra.mxu0 0.0
    %668 = vmatprep.subr.mxu0 0.0
    %669 = vmatpush1.msra.mxu0 0.0
    %670 = vmatprep.subr.mxu0 0.0
    %671 = vmatpush1.msra.mxu0 0.0
    %672 = vmatprep.subr.mxu0 0.0
    %673 = vmatpush1.msra.mxu0 0.0
    %674 = vmatprep.subr.mxu0 0.0
    %675 = vmatpush1.msra.mxu0 0.0
    %676 = vmatprep.subr.mxu0 0.0
    %677 = vmatpush1.msra.mxu0 0.0
    %678 = vmatprep.subr.mxu0 0.0
    %679 = vmatpush1.msra.mxu0 0.0
    %680 = vmatprep.subr.mxu0 0.0
    %681 = vmatpush1.msra.mxu0 0.0
    %682 = vmatprep.subr.mxu0 0.0
    %683 = vmatpush1.msra.mxu0 0.0
    %684 = vmatprep.subr.mxu0 0.0
    %685 = vmatpush1.msra.mxu0 0.0
    %686 = vmatprep.subr.mxu0 0.0
    %687 = vmatpush1.msra.mxu0 0.0
    %688 = vmatprep.subr.mxu0 0.0
    %689 = vmatpush1.msra.mxu0 0.0
    %690 = vmatprep.subr.mxu0 0.0
    %691 = vmatpush1.msra.mxu0 0.0
    %692 = vmatprep.subr.mxu0 0.0
    %693 = vmatpush1.msra.mxu0 0.0
    %694 = vmatprep.subr.mxu0 0.0
    %695 = vmatpush1.msra.mxu0 0.0
    %696 = vmatprep.subr.mxu0 0.0
    %697 = vmatpush1.msra.mxu0 0.0
    %698 = vmatprep.subr.mxu0 0.0
    %699 = vmatpush1.msra.mxu0 0.0
    %700 = vmatprep.mubr.f32.mxu0 0.0
    %701 = vmatmul.mubr.f32.gmra.mrb[0].mxu0 %v634
    %v702 = vpop.f32.mrb[0].mxu0
    %v703 = vadd.f32 0.0, %v702
    %v704 = vpop.f32.mrb[0].mxu0
    %705 = vdwg.mxu0
    %v706 = vadd.f32 %v633, %v703
    %v707 = vxor.u32 %v706, 2147483648
    %v708 = vmul.f32 %v707, 1.442695
    %v709 = vpow.pop %v708
    %v710 = vadd.f32 %v709, 1.0
    %v711 = vrcp.pop %v710
    %v712 = vmul.f32 1.0, %v711
    %v713 = vtanh.pop %v706
    %v714 = vmul.f32 %v712, %v514
    %716 = vrot.lane.b32.xlu0 %v713, 64
    %v717 = vpop.permute.xlu0 %716
    %v719 = vmul.f32 %v712, %v717
    %721 = vrot.lane.b32.xlu0 %v719, 32
    %v722 = vpop.permute.xlu0 %721
    %v724 = vadd.f32 %v714, %v722
    %v725 = vtanh.pop %v724
    %727 = vrot.lane.b32.xlu0 %v725, 64
    %v728 = vpop.permute.xlu0 %727
    %v730 = vmul.f32 %v712, %v728
    %732 = vrot.lane.b32.xlu0 %v730, 32
    %v733 = vpop.permute.xlu0 %732
    %735 = vrot.lane.b32.xlu0 %v625, 64
    %v736 = vpop.permute.xlu0 %735
    %v738 = vsel %vm209, %v733, %v736
    %v740 = vsel %vm319, %v738, 0
    %742 = vmatprep.subr.mxu0 0.0
    %743 = vmatpush1.msra.mxu0 %v199
    %744 = vmatprep.subr.mxu0 0.0
    %745 = vmatpush1.msra.mxu0 %v200
    %746 = vmatprep.subr.mxu0 0.0
    %747 = vmatpush1.msra.mxu0 %v201
    %748 = vmatprep.subr.mxu0 0.0
    %749 = vmatpush1.msra.mxu0 %v202
    %750 = vmatprep.subr.mxu0 0.0
    %751 = vmatpush1.msra.mxu0 %v203
    %752 = vmatprep.subr.mxu0 0.0
    %753 = vmatpush1.msra.mxu0 %v204
    %754 = vmatprep.subr.mxu0 0.0
    %755 = vmatpush1.msra.mxu0 %v205
    %756 = vmatprep.subr.mxu0 0.0
    %757 = vmatpush1.msra.mxu0 %v206
    %758 = vmatprep.subr.mxu0 0.0
    %759 = vmatpush1.msra.mxu0 0.0
    %760 = vmatprep.subr.mxu0 0.0
    %761 = vmatpush1.msra.mxu0 0.0
    %762 = vmatprep.subr.mxu0 0.0
    %763 = vmatpush1.msra.mxu0 0.0
    %764 = vmatprep.subr.mxu0 0.0
    %765 = vmatpush1.msra.mxu0 0.0
    %766 = vmatprep.subr.mxu0 0.0
    %767 = vmatpush1.msra.mxu0 0.0
    %768 = vmatprep.subr.mxu0 0.0
    %769 = vmatpush1.msra.mxu0 0.0
    %770 = vmatprep.subr.mxu0 0.0
    %771 = vmatpush1.msra.mxu0 0.0
    %772 = vmatprep.subr.mxu0 0.0
    %773 = vmatpush1.msra.mxu0 0.0
    %774 = vmatprep.subr.mxu0 0.0
    %775 = vmatpush1.msra.mxu0 0.0
    %776 = vmatprep.subr.mxu0 0.0
    %777 = vmatpush1.msra.mxu0 0.0
    %778 = vmatprep.subr.mxu0 0.0
    %779 = vmatpush1.msra.mxu0 0.0
    %780 = vmatprep.subr.mxu0 0.0
    %781 = vmatpush1.msra.mxu0 0.0
    %782 = vmatprep.subr.mxu0 0.0
    %783 = vmatpush1.msra.mxu0 0.0
    %784 = vmatprep.subr.mxu0 0.0
    %785 = vmatpush1.msra.mxu0 0.0
    %786 = vmatprep.subr.mxu0 0.0
    %787 = vmatpush1.msra.mxu0 0.0
    %788 = vmatprep.subr.mxu0 0.0
    %789 = vmatpush1.msra.mxu0 0.0
    %790 = vmatprep.subr.mxu0 0.0
    %791 = vmatpush1.msra.mxu0 0.0
    %792 = vmatprep.subr.mxu0 0.0
    %793 = vmatpush1.msra.mxu0 0.0
    %794 = vmatprep.subr.mxu0 0.0
    %795 = vmatpush1.msra.mxu0 0.0
    %796 = vmatprep.subr.mxu0 0.0
    %797 = vmatpush1.msra.mxu0 0.0
    %798 = vmatprep.subr.mxu0 0.0
    %799 = vmatpush1.msra.mxu0 0.0
    %800 = vmatprep.subr.mxu0 0.0
    %801 = vmatpush1.msra.mxu0 0.0
    %802 = vmatprep.subr.mxu0 0.0
    %803 = vmatpush1.msra.mxu0 0.0
    %804 = vmatprep.subr.mxu0 0.0
    %805 = vmatpush1.msra.mxu0 0.0
    %806 = vmatprep.mubr.f32.mxu0 0.0
    %807 = vmatmul.mubr.f32.gmra.mrb[0].mxu0 %v740
    %v808 = vpop.f32.mrb[0].mxu0
    %v809 = vadd.f32 %v317, %v808
    %v810 = vpop.f32.mrb[0].mxu0
    %811 = vdwg.mxu0
    %v812 = vxor.u32 %v809, 2147483648
    %v813 = vmul.f32 %v812, 1.442695
    %v814 = vpow.pop %v813
    %v815 = vadd.f32 %v814, 1.0
    %v816 = vrcp.pop %v815
    %v817 = vmul.f32 1.0, %v816
    %v818 = vtanh.pop %v809
    %v819 = vmul.f32 %v817, %v619
    %821 = vrot.lane.b32.xlu0 %v818, 64
    %v822 = vpop.permute.xlu0 %821
    %v824 = vmul.f32 %v817, %v822
    %826 = vrot.lane.b32.xlu0 %v824, 32
    %v827 = vpop.permute.xlu0 %826
    %v829 = vadd.f32 %v819, %v827
    %v830 = vtanh.pop %v829
    %832 = vrot.lane.b32.xlu0 %v830, 64
    %v833 = vpop.permute.xlu0 %832
    %v835 = vmul.f32 %v817, %v833
    %837 = vrot.lane.b32.xlu0 %v835, 32
    %v838 = vpop.permute.xlu0 %837
    %s840 = scalar_lea.vmem %s10, 16
    %841 = vst.msk [vmem:[%s840] sm:$0xff] %vm209, %v838
    %s842 = scalar_lea.vmem [#allocation2], 24
    %v843 = vld [vmem:[%s842] sm:$0xff]
    %v844 = vsel %vm209, %v733, 0
    %846 = vmatprep.subr.mxu0 0.0
    %847 = vmatpush1.msra.mxu0 %v195
    %848 = vmatprep.subr.mxu0 0.0
    %849 = vmatpush1.msra.mxu0 %v196
    %850 = vmatprep.subr.mxu0 0.0
    %851 = vmatpush1.msra.mxu0 %v197
    %852 = vmatprep.subr.mxu0 0.0
    %853 = vmatpush1.msra.mxu0 %v198
    %854 = vmatprep.subr.mxu0 0.0
    %855 = vmatpush1.msra.mxu0 0.0
    %856 = vmatprep.subr.mxu0 0.0
    %857 = vmatpush1.msra.mxu0 0.0
    %858 = vmatprep.subr.mxu0 0.0
    %859 = vmatpush1.msra.mxu0 0.0
    %860 = vmatprep.subr.mxu0 0.0
    %861 = vmatpush1.msra.mxu0 0.0
    %862 = vmatprep.subr.mxu0 0.0
    %863 = vmatpush1.msra.mxu0 0.0
    %864 = vmatprep.subr.mxu0 0.0
    %865 = vmatpush1.msra.mxu0 0.0
    %866 = vmatprep.subr.mxu0 0.0
    %867 = vmatpush1.msra.mxu0 0.0
    %868 = vmatprep.subr.mxu0 0.0
    %869 = vmatpush1.msra.mxu0 0.0
    %870 = vmatprep.subr.mxu0 0.0
    %871 = vmatpush1.msra.mxu0 0.0
    %872 = vmatprep.subr.mxu0 0.0
    %873 = vmatpush1.msra.mxu0 0.0
    %874 = vmatprep.subr.mxu0 0.0
    %875 = vmatpush1.msra.mxu0 0.0
    %876 = vmatprep.subr.mxu0 0.0
    %877 = vmatpush1.msra.mxu0 0.0
    %878 = vmatprep.subr.mxu0 0.0
    %879 = vmatpush1.msra.mxu0 0.0
    %880 = vmatprep.subr.mxu0 0.0
    %881 = vmatpush1.msra.mxu0 0.0
    %882 = vmatprep.subr.mxu0 0.0
    %883 = vmatpush1.msra.mxu0 0.0
    %884 = vmatprep.subr.mxu0 0.0
    %885 = vmatpush1.msra.mxu0 0.0
    %886 = vmatprep.subr.mxu0 0.0
    %887 = vmatpush1.msra.mxu0 0.0
    %888 = vmatprep.subr.mxu0 0.0
    %889 = vmatpush1.msra.mxu0 0.0
    %890 = vmatprep.subr.mxu0 0.0
    %891 = vmatpush1.msra.mxu0 0.0
    %892 = vmatprep.subr.mxu0 0.0
    %893 = vmatpush1.msra.mxu0 0.0
    %894 = vmatprep.subr.mxu0 0.0
    %895 = vmatpush1.msra.mxu0 0.0
    %896 = vmatprep.subr.mxu0 0.0
    %897 = vmatpush1.msra.mxu0 0.0
    %898 = vmatprep.subr.mxu0 0.0
    %899 = vmatpush1.msra.mxu0 0.0
    %900 = vmatprep.subr.mxu0 0.0
    %901 = vmatpush1.msra.mxu0 0.0
    %902 = vmatprep.subr.mxu0 0.0
    %903 = vmatpush1.msra.mxu0 0.0
    %904 = vmatprep.subr.mxu0 0.0
    %905 = vmatpush1.msra.mxu0 0.0
    %906 = vmatprep.subr.mxu0 0.0
    %907 = vmatpush1.msra.mxu0 0.0
    %908 = vmatprep.subr.mxu0 0.0
    %909 = vmatpush1.msra.mxu0 0.0
    %910 = vmatprep.mubr.f32.mxu0 0.0
    %911 = vmatmul.mubr.f32.gmra.mrb[0].mxu0 %v844
    %v912 = vpop.f32.mrb[0].mxu0
    %v913 = vadd.f32 0.0, %v912
    %v914 = vpop.f32.mrb[0].mxu0
    %915 = vdwg.mxu0
    %v916 = vadd.f32 %v843, %v913
    %v917 = vxor.u32 %v916, 2147483648
    %v918 = vmul.f32 %v917, 1.442695
    %v919 = vpow.pop %v918
    %v920 = vadd.f32 %v919, 1.0
    %v921 = vrcp.pop %v920
    %v922 = vmul.f32 1.0, %v921
    %v923 = vtanh.pop %v916
    %v924 = vmul.f32 %v922, %v724
    %926 = vrot.lane.b32.xlu0 %v923, 64
    %v927 = vpop.permute.xlu0 %926
    %v929 = vmul.f32 %v922, %v927
    %931 = vrot.lane.b32.xlu0 %v929, 32
    %v932 = vpop.permute.xlu0 %931
    %v934 = vadd.f32 %v924, %v932
    %v935 = vtanh.pop %v934
    %937 = vrot.lane.b32.xlu0 %v935, 64
    %v938 = vpop.permute.xlu0 %937
    %v940 = vmul.f32 %v922, %v938
    %942 = vrot.lane.b32.xlu0 %v940, 32
    %v943 = vpop.permute.xlu0 %942
    %945 = vrot.lane.b32.xlu0 %v835, 64
    %v946 = vpop.permute.xlu0 %945
    %v948 = vsel %vm209, %v943, %v946
    %v950 = vsel %vm319, %v948, 0
    %952 = vmatprep.subr.mxu0 0.0
    %953 = vmatpush1.msra.mxu0 %v199
    %954 = vmatprep.subr.mxu0 0.0
    %955 = vmatpush1.msra.mxu0 %v200
    %956 = vmatprep.subr.mxu0 0.0
    %957 = vmatpush1.msra.mxu0 %v201
    %958 = vmatprep.subr.mxu0 0.0
    %959 = vmatpush1.msra.mxu0 %v202
    %960 = vmatprep.subr.mxu0 0.0
    %961 = vmatpush1.msra.mxu0 %v203
    %962 = vmatprep.subr.mxu0 0.0
    %963 = vmatpush1.msra.mxu0 %v204
    %964 = vmatprep.subr.mxu0 0.0
    %965 = vmatpush1.msra.mxu0 %v205
    %966 = vmatprep.subr.mxu0 0.0
    %967 = vmatpush1.msra.mxu0 %v206
    %968 = vmatprep.subr.mxu0 0.0
    %969 = vmatpush1.msra.mxu0 0.0
    %970 = vmatprep.subr.mxu0 0.0
    %971 = vmatpush1.msra.mxu0 0.0
    %972 = vmatprep.subr.mxu0 0.0
    %973 = vmatpush1.msra.mxu0 0.0
    %974 = vmatprep.subr.mxu0 0.0
    %975 = vmatpush1.msra.mxu0 0.0
    %976 = vmatprep.subr.mxu0 0.0
    %977 = vmatpush1.msra.mxu0 0.0
    %978 = vmatprep.subr.mxu0 0.0
    %979 = vmatpush1.msra.mxu0 0.0
    %980 = vmatprep.subr.mxu0 0.0
    %981 = vmatpush1.msra.mxu0 0.0
    %982 = vmatprep.subr.mxu0 0.0
    %983 = vmatpush1.msra.mxu0 0.0
    %984 = vmatprep.subr.mxu0 0.0
    %985 = vmatpush1.msra.mxu0 0.0
    %986 = vmatprep.subr.mxu0 0.0
    %987 = vmatpush1.msra.mxu0 0.0
    %988 = vmatprep.subr.mxu0 0.0
    %989 = vmatpush1.msra.mxu0 0.0
    %990 = vmatprep.subr.mxu0 0.0
    %991 = vmatpush1.msra.mxu0 0.0
    %992 = vmatprep.subr.mxu0 0.0
    %993 = vmatpush1.msra.mxu0 0.0
    %994 = vmatprep.subr.mxu0 0.0
    %995 = vmatpush1.msra.mxu0 0.0
    %996 = vmatprep.subr.mxu0 0.0
    %997 = vmatpush1.msra.mxu0 0.0
    %998 = vmatprep.subr.mxu0 0.0
    %999 = vmatpush1.msra.mxu0 0.0
    %1000 = vmatprep.subr.mxu0 0.0
    %1001 = vmatpush1.msra.mxu0 0.0
    %1002 = vmatprep.subr.mxu0 0.0
    %1003 = vmatpush1.msra.mxu0 0.0
    %1004 = vmatprep.subr.mxu0 0.0
    %1005 = vmatpush1.msra.mxu0 0.0
    %1006 = vmatprep.subr.mxu0 0.0
    %1007 = vmatpush1.msra.mxu0 0.0
    %1008 = vmatprep.subr.mxu0 0.0
    %1009 = vmatpush1.msra.mxu0 0.0
    %1010 = vmatprep.subr.mxu0 0.0
    %1011 = vmatpush1.msra.mxu0 0.0
    %1012 = vmatprep.subr.mxu0 0.0
    %1013 = vmatpush1.msra.mxu0 0.0
    %1014 = vmatprep.subr.mxu0 0.0
    %1015 = vmatpush1.msra.mxu0 0.0
    %1016 = vmatprep.mubr.f32.mxu0 0.0
    %1017 = vmatmul.mubr.f32.gmra.mrb[0].mxu0 %v950
    %v1018 = vpop.f32.mrb[0].mxu0
    %v1019 = vadd.f32 %v317, %v1018
    %v1020 = vpop.f32.mrb[0].mxu0
    %1021 = vdwg.mxu0
    %v1022 = vxor.u32 %v1019, 2147483648
    %v1023 = vmul.f32 %v1022, 1.442695
    %v1024 = vpow.pop %v1023
    %v1025 = vadd.f32 %v1024, 1.0
    %v1026 = vrcp.pop %v1025
    %v1027 = vmul.f32 1.0, %v1026
    %v1028 = vtanh.pop %v1019
    %v1029 = vmul.f32 %v1027, %v829
    %1031 = vrot.lane.b32.xlu0 %v1028, 64
    %v1032 = vpop.permute.xlu0 %1031
    %v1034 = vmul.f32 %v1027, %v1032
    %1036 = vrot.lane.b32.xlu0 %v1034, 32
    %v1037 = vpop.permute.xlu0 %1036
    %v1039 = vadd.f32 %v1029, %v1037
    %v1040 = vtanh.pop %v1039
    %1042 = vrot.lane.b32.xlu0 %v1040, 64
    %v1043 = vpop.permute.xlu0 %1042
    %v1045 = vmul.f32 %v1027, %v1043
    %1047 = vrot.lane.b32.xlu0 %v1045, 32
    %v1048 = vpop.permute.xlu0 %1047
    %s1050 = scalar_lea.vmem %s10, 24
    %1051 = vst.msk [vmem:[%s1050] sm:$0xff] %vm209, %v1048
    %s1052 = scalar_lea.vmem [#allocation2], 32
    %v1053 = vld [vmem:[%s1052] sm:$0xff]
    %v1054 = vsel %vm209, %v943, 0
    %1056 = vmatprep.subr.mxu0 0.0
    %1057 = vmatpush1.msra.mxu0 %v195
    %1058 = vmatprep.subr.mxu0 0.0
    %1059 = vmatpush1.msra.mxu0 %v196
    %1060 = vmatprep.subr.mxu0 0.0
    %1061 = vmatpush1.msra.mxu0 %v197
    %1062 = vmatprep.subr.mxu0 0.0
    %1063 = vmatpush1.msra.mxu0 %v198
    %1064 = vmatprep.subr.mxu0 0.0
    %1065 = vmatpush1.msra.mxu0 0.0
    %1066 = vmatprep.subr.mxu0 0.0
    %1067 = vmatpush1.msra.mxu0 0.0
    %1068 = vmatprep.subr.mxu0 0.0
    %1069 = vmatpush1.msra.mxu0 0.0
    %1070 = vmatprep.subr.mxu0 0.0
    %1071 = vmatpush1.msra.mxu0 0.0
    %1072 = vmatprep.subr.mxu0 0.0
    %1073 = vmatpush1.msra.mxu0 0.0
    %1074 = vmatprep.subr.mxu0 0.0
    %1075 = vmatpush1.msra.mxu0 0.0
    %1076 = vmatprep.subr.mxu0 0.0
    %1077 = vmatpush1.msra.mxu0 0.0
    %1078 = vmatprep.subr.mxu0 0.0
    %1079 = vmatpush1.msra.mxu0 0.0
    %1080 = vmatprep.subr.mxu0 0.0
    %1081 = vmatpush1.msra.mxu0 0.0
    %1082 = vmatprep.subr.mxu0 0.0
    %1083 = vmatpush1.msra.mxu0 0.0
    %1084 = vmatprep.subr.mxu0 0.0
    %1085 = vmatpush1.msra.mxu0 0.0
    %1086 = vmatprep.subr.mxu0 0.0
    %1087 = vmatpush1.msra.mxu0 0.0
    %1088 = vmatprep.subr.mxu0 0.0
    %1089 = vmatpush1.msra.mxu0 0.0
    %1090 = vmatprep.subr.mxu0 0.0
    %1091 = vmatpush1.msra.mxu0 0.0
    %1092 = vmatprep.subr.mxu0 0.0
    %1093 = vmatpush1.msra.mxu0 0.0
    %1094 = vmatprep.subr.mxu0 0.0
    %1095 = vmatpush1.msra.mxu0 0.0
    %1096 = vmatprep.subr.mxu0 0.0
    %1097 = vmatpush1.msra.mxu0 0.0
    %1098 = vmatprep.subr.mxu0 0.0
    %1099 = vmatpush1.msra.mxu0 0.0
    %1100 = vmatprep.subr.mxu0 0.0
    %1101 = vmatpush1.msra.mxu0 0.0
    %1102 = vmatprep.subr.mxu0 0.0
    %1103 = vmatpush1.msra.mxu0 0.0
    %1104 = vmatprep.subr.mxu0 0.0
    %1105 = vmatpush1.msra.mxu0 0.0
    %1106 = vmatprep.subr.mxu0 0.0
    %1107 = vmatpush1.msra.mxu0 0.0
    %1108 = vmatprep.subr.mxu0 0.0
    %1109 = vmatpush1.msra.mxu0 0.0
    %1110 = vmatprep.subr.mxu0 0.0
    %1111 = vmatpush1.msra.mxu0 0.0
    %1112 = vmatprep.subr.mxu0 0.0
    %1113 = vmatpush1.msra.mxu0 0.0
    %1114 = vmatprep.subr.mxu0 0.0
    %1115 = vmatpush1.msra.mxu0 0.0
    %1116 = vmatprep.subr.mxu0 0.0
    %1117 = vmatpush1.msra.mxu0 0.0
    %1118 = vmatprep.subr.mxu0 0.0
    %1119 = vmatpush1.msra.mxu0 0.0
    %1120 = vmatprep.mubr.f32.mxu0 0.0
    %1121 = vmatmul.mubr.f32.gmra.mrb[0].mxu0 %v1054
    %v1122 = vpop.f32.mrb[0].mxu0
    %v1123 = vadd.f32 0.0, %v1122
    %v1124 = vpop.f32.mrb[0].mxu0
    %1125 = vdwg.mxu0
    %v1126 = vadd.f32 %v1053, %v1123
    %v1127 = vxor.u32 %v1126, 2147483648
    %v1128 = vmul.f32 %v1127, 1.442695
    %v1129 = vpow.pop %v1128
    %v1130 = vadd.f32 %v1129, 1.0
    %v1131 = vrcp.pop %v1130
    %v1132 = vmul.f32 1.0, %v1131
    %v1133 = vtanh.pop %v1126
    %v1134 = vmul.f32 %v1132, %v934
    %1136 = vrot.lane.b32.xlu0 %v1133, 64
    %v1137 = vpop.permute.xlu0 %1136
    %v1139 = vmul.f32 %v1132, %v1137
    %1141 = vrot.lane.b32.xlu0 %v1139, 32
    %v1142 = vpop.permute.xlu0 %1141
    %v1144 = vadd.f32 %v1134, %v1142
    %v1145 = vtanh.pop %v1144
    %1147 = vrot.lane.b32.xlu0 %v1145, 64
    %v1148 = vpop.permute.xlu0 %1147
    %v1150 = vmul.f32 %v1132, %v1148
    %1152 = vrot.lane.b32.xlu0 %v1150, 32
    %v1153 = vpop.permute.xlu0 %1152
    %1155 = vrot.lane.b32.xlu0 %v1045, 64
    %v1156 = vpop.permute.xlu0 %1155
    %v1158 = vsel %vm209, %v1153, %v1156
    %v1160 = vsel %vm319, %v1158, 0
    %1162 = vmatprep.subr.mxu0 0.0
    %1163 = vmatpush1.msra.mxu0 %v199
    %1164 = vmatprep.subr.mxu0 0.0
    %1165 = vmatpush1.msra.mxu0 %v200
    %1166 = vmatprep.subr.mxu0 0.0
    %1167 = vmatpush1.msra.mxu0 %v201
    %1168 = vmatprep.subr.mxu0 0.0
    %1169 = vmatpush1.msra.mxu0 %v202
    %1170 = vmatprep.subr.mxu0 0.0
    %1171 = vmatpush1.msra.mxu0 %v203
    %1172 = vmatprep.subr.mxu0 0.0
    %1173 = vmatpush1.msra.mxu0 %v204
    %1174 = vmatprep.subr.mxu0 0.0
    %1175 = vmatpush1.msra.mxu0 %v205
    %1176 = vmatprep.subr.mxu0 0.0
    %1177 = vmatpush1.msra.mxu0 %v206
    %1178 = vmatprep.subr.mxu0 0.0
    %1179 = vmatpush1.msra.mxu0 0.0
    %1180 = vmatprep.subr.mxu0 0.0
    %1181 = vmatpush1.msra.mxu0 0.0
    %1182 = vmatprep.subr.mxu0 0.0
    %1183 = vmatpush1.msra.mxu0 0.0
    %1184 = vmatprep.subr.mxu0 0.0
    %1185 = vmatpush1.msra.mxu0 0.0
    %1186 = vmatprep.subr.mxu0 0.0
    %1187 = vmatpush1.msra.mxu0 0.0
    %1188 = vmatprep.subr.mxu0 0.0
    %1189 = vmatpush1.msra.mxu0 0.0
    %1190 = vmatprep.subr.mxu0 0.0
    %1191 = vmatpush1.msra.mxu0 0.0
    %1192 = vmatprep.subr.mxu0 0.0
    %1193 = vmatpush1.msra.mxu0 0.0
    %1194 = vmatprep.subr.mxu0 0.0
    %1195 = vmatpush1.msra.mxu0 0.0
    %1196 = vmatprep.subr.mxu0 0.0
    %1197 = vmatpush1.msra.mxu0 0.0
    %1198 = vmatprep.subr.mxu0 0.0
    %1199 = vmatpush1.msra.mxu0 0.0
    %1200 = vmatprep.subr.mxu0 0.0
    %1201 = vmatpush1.msra.mxu0 0.0
    %1202 = vmatprep.subr.mxu0 0.0
    %1203 = vmatpush1.msra.mxu0 0.0
    %1204 = vmatprep.subr.mxu0 0.0
    %1205 = vmatpush1.msra.mxu0 0.0
    %1206 = vmatprep.subr.mxu0 0.0
    %1207 = vmatpush1.msra.mxu0 0.0
    %1208 = vmatprep.subr.mxu0 0.0
    %1209 = vmatpush1.msra.mxu0 0.0
    %1210 = vmatprep.subr.mxu0 0.0
    %1211 = vmatpush1.msra.mxu0 0.0
    %1212 = vmatprep.subr.mxu0 0.0
    %1213 = vmatpush1.msra.mxu0 0.0
    %1214 = vmatprep.subr.mxu0 0.0
    %1215 = vmatpush1.msra.mxu0 0.0
    %1216 = vmatprep.subr.mxu0 0.0
    %1217 = vmatpush1.msra.mxu0 0.0
    %1218 = vmatprep.subr.mxu0 0.0
    %1219 = vmatpush1.msra.mxu0 0.0
    %1220 = vmatprep.subr.mxu0 0.0
    %1221 = vmatpush1.msra.mxu0 0.0
    %1222 = vmatprep.subr.mxu0 0.0
    %1223 = vmatpush1.msra.mxu0 0.0
    %1224 = vmatprep.subr.mxu0 0.0
    %1225 = vmatpush1.msra.mxu0 0.0
    %1226 = vmatprep.mubr.f32.mxu0 0.0
    %1227 = vmatmul.mubr.f32.gmra.mrb[0].mxu0 %v1160
    %v1228 = vpop.f32.mrb[0].mxu0
    %v1229 = vadd.f32 %v317, %v1228
    %v1230 = vpop.f32.mrb[0].mxu0
    %1231 = vdwg.mxu0
    %v1232 = vxor.u32 %v1229, 2147483648
    %v1233 = vmul.f32 %v1232, 1.442695
    %v1234 = vpow.pop %v1233
    %v1235 = vadd.f32 %v1234, 1.0
    %v1236 = vrcp.pop %v1235
    %v1237 = vmul.f32 1.0, %v1236
    %v1238 = vtanh.pop %v1229
    %v1239 = vmul.f32 %v1237, %v1039
    %1241 = vrot.lane.b32.xlu0 %v1238, 64
    %v1242 = vpop.permute.xlu0 %1241
    %v1244 = vmul.f32 %v1237, %v1242
    %1246 = vrot.lane.b32.xlu0 %v1244, 32
    %v1247 = vpop.permute.xlu0 %1246
    %v1249 = vadd.f32 %v1239, %v1247
    %v1250 = vtanh.pop %v1249
    %1252 = vrot.lane.b32.xlu0 %v1250, 64
    %v1253 = vpop.permute.xlu0 %1252
    %v1255 = vmul.f32 %v1237, %v1253
    %1257 = vrot.lane.b32.xlu0 %v1255, 32
    %v1258 = vpop.permute.xlu0 %1257
    %s1260 = scalar_lea.vmem %s10, 32
    %1261 = vst.msk [vmem:[%s1260] sm:$0xff] %vm209, %v1258
    %s1262 = scalar_lea.vmem [#allocation2], 40
    %v1263 = vld [vmem:[%s1262] sm:$0xff]
    %v1264 = vsel %vm209, %v1153, 0
    %1266 = vmatprep.subr.mxu0 0.0
    %1267 = vmatpush1.msra.mxu0 %v195
    %1268 = vmatprep.subr.mxu0 0.0
    %1269 = vmatpush1.msra.mxu0 %v196
    %1270 = vmatprep.subr.mxu0 0.0
    %1271 = vmatpush1.msra.mxu0 %v197
    %1272 = vmatprep.subr.mxu0 0.0
    %1273 = vmatpush1.msra.mxu0 %v198
    %1274 = vmatprep.subr.mxu0 0.0
    %1275 = vmatpush1.msra.mxu0 0.0
    %1276 = vmatprep.subr.mxu0 0.0
    %1277 = vmatpush1.msra.mxu0 0.0
    %1278 = vmatprep.subr.mxu0 0.0
    %1279 = vmatpush1.msra.mxu0 0.0
    %1280 = vmatprep.subr.mxu0 0.0
    %1281 = vmatpush1.msra.mxu0 0.0
    %1282 = vmatprep.subr.mxu0 0.0
    %1283 = vmatpush1.msra.mxu0 0.0
    %1284 = vmatprep.subr.mxu0 0.0
    %1285 = vmatpush1.msra.mxu0 0.0
    %1286 = vmatprep.subr.mxu0 0.0
    %1287 = vmatpush1.msra.mxu0 0.0
    %1288 = vmatprep.subr.mxu0 0.0
    %1289 = vmatpush1.msra.mxu0 0.0
    %1290 = vmatprep.subr.mxu0 0.0
    %1291 = vmatpush1.msra.mxu0 0.0
    %1292 = vmatprep.subr.mxu0 0.0
    %1293 = vmatpush1.msra.mxu0 0.0
    %1294 = vmatprep.subr.mxu0 0.0
    %1295 = vmatpush1.msra.mxu0 0.0
    %1296 = vmatprep.subr.mxu0 0.0
    %1297 = vmatpush1.msra.mxu0 0.0
    %1298 = vmatprep.subr.mxu0 0.0
    %1299 = vmatpush1.msra.mxu0 0.0
    %1300 = vmatprep.subr.mxu0 0.0
    %1301 = vmatpush1.msra.mxu0 0.0
    %1302 = vmatprep.subr.mxu0 0.0
    %1303 = vmatpush1.msra.mxu0 0.0
    %1304 = vmatprep.subr.mxu0 0.0
    %1305 = vmatpush1.msra.mxu0 0.0
    %1306 = vmatprep.subr.mxu0 0.0
    %1307 = vmatpush1.msra.mxu0 0.0
    %1308 = vmatprep.subr.mxu0 0.0
    %1309 = vmatpush1.msra.mxu0 0.0
    %1310 = vmatprep.subr.mxu0 0.0
    %1311 = vmatpush1.msra.mxu0 0.0
    %1312 = vmatprep.subr.mxu0 0.0
    %1313 = vmatpush1.msra.mxu0 0.0
    %1314 = vmatprep.subr.mxu0 0.0
    %1315 = vmatpush1.msra.mxu0 0.0
    %1316 = vmatprep.subr.mxu0 0.0
    %1317 = vmatpush1.msra.mxu0 0.0
    %1318 = vmatprep.subr.mxu0 0.0
    %1319 = vmatpush1.msra.mxu0 0.0
    %1320 = vmatprep.subr.mxu0 0.0
    %1321 = vmatpush1.msra.mxu0 0.0
    %1322 = vmatprep.subr.mxu0 0.0
    %1323 = vmatpush1.msra.mxu0 0.0
    %1324 = vmatprep.subr.mxu0 0.0
    %1325 = vmatpush1.msra.mxu0 0.0
    %1326 = vmatprep.subr.mxu0 0.0
    %1327 = vmatpush1.msra.mxu0 0.0
    %1328 = vmatprep.subr.mxu0 0.0
    %1329 = vmatpush1.msra.mxu0 0.0
    %1330 = vmatprep.mubr.f32.mxu0 0.0
    %1331 = vmatmul.mubr.f32.gmra.mrb[0].mxu0 %v1264
    %v1332 = vpop.f32.mrb[0].mxu0
    %v1333 = vadd.f32 0.0, %v1332
    %v1334 = vpop.f32.mrb[0].mxu0
    %1335 = vdwg.mxu0
    %v1336 = vadd.f32 %v1263, %v1333
    %v1337 = vxor.u32 %v1336, 2147483648
    %v1338 = vmul.f32 %v1337, 1.442695
    %v1339 = vpow.pop %v1338
    %v1340 = vadd.f32 %v1339, 1.0
    %v1341 = vrcp.pop %v1340
    %v1342 = vmul.f32 1.0, %v1341
    %v1343 = vtanh.pop %v1336
    %v1344 = vmul.f32 %v1342, %v1144
    %1346 = vrot.lane.b32.xlu0 %v1343, 64
    %v1347 = vpop.permute.xlu0 %1346
    %v1349 = vmul.f32 %v1342, %v1347
    %1351 = vrot.lane.b32.xlu0 %v1349, 32
    %v1352 = vpop.permute.xlu0 %1351
    %v1354 = vadd.f32 %v1344, %v1352
    %v1355 = vtanh.pop %v1354
    %1357 = vrot.lane.b32.xlu0 %v1355, 64
    %v1358 = vpop.permute.xlu0 %1357
    %v1360 = vmul.f32 %v1342, %v1358
    %1362 = vrot.lane.b32.xlu0 %v1360, 32
    %v1363 = vpop.permute.xlu0 %1362
    %1365 = vrot.lane.b32.xlu0 %v1255, 64
    %v1366 = vpop.permute.xlu0 %1365
    %v1368 = vsel %vm209, %v1363, %v1366
    %v1370 = vsel %vm319, %v1368, 0
    %1372 = vmatprep.subr.mxu0 0.0
    %1373 = vmatpush1.msra.mxu0 %v199
    %1374 = vmatprep.subr.mxu0 0.0
    %1375 = vmatpush1.msra.mxu0 %v200
    %1376 = vmatprep.subr.mxu0 0.0
    %1377 = vmatpush1.msra.mxu0 %v201
    %1378 = vmatprep.subr.mxu0 0.0
    %1379 = vmatpush1.msra.mxu0 %v202
    %1380 = vmatprep.subr.mxu0 0.0
    %1381 = vmatpush1.msra.mxu0 %v203
    %1382 = vmatprep.subr.mxu0 0.0
    %1383 = vmatpush1.msra.mxu0 %v204
    %1384 = vmatprep.subr.mxu0 0.0
    %1385 = vmatpush1.msra.mxu0 %v205
    %1386 = vmatprep.subr.mxu0 0.0
    %1387 = vmatpush1.msra.mxu0 %v206
    %1388 = vmatprep.subr.mxu0 0.0
    %1389 = vmatpush1.msra.mxu0 0.0
    %1390 = vmatprep.subr.mxu0 0.0
    %1391 = vmatpush1.msra.mxu0 0.0
    %1392 = vmatprep.subr.mxu0 0.0
    %1393 = vmatpush1.msra.mxu0 0.0
    %1394 = vmatprep.subr.mxu0 0.0
    %1395 = vmatpush1.msra.mxu0 0.0
    %1396 = vmatprep.subr.mxu0 0.0
    %1397 = vmatpush1.msra.mxu0 0.0
    %1398 = vmatprep.subr.mxu0 0.0
    %1399 = vmatpush1.msra.mxu0 0.0
    %1400 = vmatprep.subr.mxu0 0.0
    %1401 = vmatpush1.msra.mxu0 0.0
    %1402 = vmatprep.subr.mxu0 0.0
    %1403 = vmatpush1.msra.mxu0 0.0
    %1404 = vmatprep.subr.mxu0 0.0
    %1405 = vmatpush1.msra.mxu0 0.0
    %1406 = vmatprep.subr.mxu0 0.0
    %1407 = vmatpush1.msra.mxu0 0.0
    %1408 = vmatprep.subr.mxu0 0.0
    %1409 = vmatpush1.msra.mxu0 0.0
    %1410 = vmatprep.subr.mxu0 0.0
    %1411 = vmatpush1.msra.mxu0 0.0
    %1412 = vmatprep.subr.mxu0 0.0
    %1413 = vmatpush1.msra.mxu0 0.0
    %1414 = vmatprep.subr.mxu0 0.0
    %1415 = vmatpush1.msra.mxu0 0.0
    %1416 = vmatprep.subr.mxu0 0.0
    %1417 = vmatpush1.msra.mxu0 0.0
    %1418 = vmatprep.subr.mxu0 0.0
    %1419 = vmatpush1.msra.mxu0 0.0
    %1420 = vmatprep.subr.mxu0 0.0
    %1421 = vmatpush1.msra.mxu0 0.0
    %1422 = vmatprep.subr.mxu0 0.0
    %1423 = vmatpush1.msra.mxu0 0.0
    %1424 = vmatprep.subr.mxu0 0.0
    %1425 = vmatpush1.msra.mxu0 0.0
    %1426 = vmatprep.subr.mxu0 0.0
    %1427 = vmatpush1.msra.mxu0 0.0
    %1428 = vmatprep.subr.mxu0 0.0
    %1429 = vmatpush1.msra.mxu0 0.0
    %1430 = vmatprep.subr.mxu0 0.0
    %1431 = vmatpush1.msra.mxu0 0.0
    %1432 = vmatprep.subr.mxu0 0.0
    %1433 = vmatpush1.msra.mxu0 0.0
    %1434 = vmatprep.subr.mxu0 0.0
    %1435 = vmatpush1.msra.mxu0 0.0
    %1436 = vmatprep.mubr.f32.mxu0 0.0
    %1437 = vmatmul.mubr.f32.gmra.mrb[0].mxu0 %v1370
    %v1438 = vpop.f32.mrb[0].mxu0
    %v1439 = vadd.f32 %v317, %v1438
    %v1440 = vpop.f32.mrb[0].mxu0
    %1441 = vdwg.mxu0
    %v1442 = vxor.u32 %v1439, 2147483648
    %v1443 = vmul.f32 %v1442, 1.442695
    %v1444 = vpow.pop %v1443
    %v1445 = vadd.f32 %v1444, 1.0
    %v1446 = vrcp.pop %v1445
    %v1447 = vmul.f32 1.0, %v1446
    %v1448 = vtanh.pop %v1439
    %v1449 = vmul.f32 %v1447, %v1249
    %1451 = vrot.lane.b32.xlu0 %v1448, 64
    %v1452 = vpop.permute.xlu0 %1451
    %v1454 = vmul.f32 %v1447, %v1452
    %1456 = vrot.lane.b32.xlu0 %v1454, 32
    %v1457 = vpop.permute.xlu0 %1456
    %v1459 = vadd.f32 %v1449, %v1457
    %v1460 = vtanh.pop %v1459
    %1462 = vrot.lane.b32.xlu0 %v1460, 64
    %v1463 = vpop.permute.xlu0 %1462
    %v1465 = vmul.f32 %v1447, %v1463
    %1467 = vrot.lane.b32.xlu0 %v1465, 32
    %v1468 = vpop.permute.xlu0 %1467
    %s1470 = scalar_lea.vmem %s10, 40
    %1471 = vst.msk [vmem:[%s1470] sm:$0xff] %vm209, %v1468
    %s1472 = scalar_lea.vmem [#allocation2], 48
    %v1473 = vld [vmem:[%s1472] sm:$0xff]
    %v1474 = vsel %vm209, %v1363, 0
    %1476 = vmatprep.subr.mxu0 0.0
    %1477 = vmatpush1.msra.mxu0 %v195
    %1478 = vmatprep.subr.mxu0 0.0
    %1479 = vmatpush1.msra.mxu0 %v196
    %1480 = vmatprep.subr.mxu0 0.0
    %1481 = vmatpush1.msra.mxu0 %v197
    %1482 = vmatprep.subr.mxu0 0.0
    %1483 = vmatpush1.msra.mxu0 %v198
    %1484 = vmatprep.subr.mxu0 0.0
    %1485 = vmatpush1.msra.mxu0 0.0
    %1486 = vmatprep.subr.mxu0 0.0
    %1487 = vmatpush1.msra.mxu0 0.0
    %1488 = vmatprep.subr.mxu0 0.0
    %1489 = vmatpush1.msra.mxu0 0.0
    %1490 = vmatprep.subr.mxu0 0.0
    %1491 = vmatpush1.msra.mxu0 0.0
    %1492 = vmatprep.subr.mxu0 0.0
    %1493 = vmatpush1.msra.mxu0 0.0
    %1494 = vmatprep.subr.mxu0 0.0
    %1495 = vmatpush1.msra.mxu0 0.0
    %1496 = vmatprep.subr.mxu0 0.0
    %1497 = vmatpush1.msra.mxu0 0.0
    %1498 = vmatprep.subr.mxu0 0.0
    %1499 = vmatpush1.msra.mxu0 0.0
    %1500 = vmatprep.subr.mxu0 0.0
    %1501 = vmatpush1.msra.mxu0 0.0
    %1502 = vmatprep.subr.mxu0 0.0
    %1503 = vmatpush1.msra.mxu0 0.0
    %1504 = vmatprep.subr.mxu0 0.0
    %1505 = vmatpush1.msra.mxu0 0.0
    %1506 = vmatprep.subr.mxu0 0.0
    %1507 = vmatpush1.msra.mxu0 0.0
    %1508 = vmatprep.subr.mxu0 0.0
    %1509 = vmatpush1.msra.mxu0 0.0
    %1510 = vmatprep.subr.mxu0 0.0
    %1511 = vmatpush1.msra.mxu0 0.0
    %1512 = vmatprep.subr.mxu0 0.0
    %1513 = vmatpush1.msra.mxu0 0.0
    %1514 = vmatprep.subr.mxu0 0.0
    %1515 = vmatpush1.msra.mxu0 0.0
    %1516 = vmatprep.subr.mxu0 0.0
    %1517 = vmatpush1.msra.mxu0 0.0
    %1518 = vmatprep.subr.mxu0 0.0
    %1519 = vmatpush1.msra.mxu0 0.0
    %1520 = vmatprep.subr.mxu0 0.0
    %1521 = vmatpush1.msra.mxu0 0.0
    %1522 = vmatprep.subr.mxu0 0.0
    %1523 = vmatpush1.msra.mxu0 0.0
    %1524 = vmatprep.subr.mxu0 0.0
    %1525 = vmatpush1.msra.mxu0 0.0
    %1526 = vmatprep.subr.mxu0 0.0
    %1527 = vmatpush1.msra.mxu0 0.0
    %1528 = vmatprep.subr.mxu0 0.0
    %1529 = vmatpush1.msra.mxu0 0.0
    %1530 = vmatprep.subr.mxu0 0.0
    %1531 = vmatpush1.msra.mxu0 0.0
    %1532 = vmatprep.subr.mxu0 0.0
    %1533 = vmatpush1.msra.mxu0 0.0
    %1534 = vmatprep.subr.mxu0 0.0
    %1535 = vmatpush1.msra.mxu0 0.0
    %1536 = vmatprep.subr.mxu0 0.0
    %1537 = vmatpush1.msra.mxu0 0.0
    %1538 = vmatprep.subr.mxu0 0.0
    %1539 = vmatpush1.msra.mxu0 0.0
    %1540 = vmatprep.mubr.f32.mxu0 0.0
    %1541 = vmatmul.mubr.f32.gmra.mrb[0].mxu0 %v1474
    %v1542 = vpop.f32.mrb[0].mxu0
    %v1543 = vadd.f32 0.0, %v1542
    %v1544 = vpop.f32.mrb[0].mxu0
    %1545 = vdwg.mxu0
    %v1546 = vadd.f32 %v1473, %v1543
    %v1547 = vxor.u32 %v1546, 2147483648
    %v1548 = vmul.f32 %v1547, 1.442695
    %v1549 = vpow.pop %v1548
    %v1550 = vadd.f32 %v1549, 1.0
    %v1551 = vrcp.pop %v1550
    %v1552 = vmul.f32 1.0, %v1551
    %v1553 = vtanh.pop %v1546
    %v1554 = vmul.f32 %v1552, %v1354
    %1556 = vrot.lane.b32.xlu0 %v1553, 64
    %v1557 = vpop.permute.xlu0 %1556
    %v1559 = vmul.f32 %v1552, %v1557
    %1561 = vrot.lane.b32.xlu0 %v1559, 32
    %v1562 = vpop.permute.xlu0 %1561
    %v1564 = vadd.f32 %v1554, %v1562
    %v1565 = vtanh.pop %v1564
    %1567 = vrot.lane.b32.xlu0 %v1565, 64
    %v1568 = vpop.permute.xlu0 %1567
    %v1570 = vmul.f32 %v1552, %v1568
    %1572 = vrot.lane.b32.xlu0 %v1570, 32
    %v1573 = vpop.permute.xlu0 %1572
    %1575 = vrot.lane.b32.xlu0 %v1465, 64
    %v1576 = vpop.permute.xlu0 %1575
    %v1578 = vsel %vm209, %v1573, %v1576
    %v1580 = vsel %vm319, %v1578, 0
    %1582 = vmatprep.subr.mxu0 0.0
    %1583 = vmatpush1.msra.mxu0 %v199
    %1584 = vmatprep.subr.mxu0 0.0
    %1585 = vmatpush1.msra.mxu0 %v200
    %1586 = vmatprep.subr.mxu0 0.0
    %1587 = vmatpush1.msra.mxu0 %v201
    %1588 = vmatprep.subr.mxu0 0.0
    %1589 = vmatpush1.msra.mxu0 %v202
    %1590 = vmatprep.subr.mxu0 0.0
    %1591 = vmatpush1.msra.mxu0 %v203
    %1592 = vmatprep.subr.mxu0 0.0
    %1593 = vmatpush1.msra.mxu0 %v204
    %1594 = vmatprep.subr.mxu0 0.0
    %1595 = vmatpush1.msra.mxu0 %v205
    %1596 = vmatprep.subr.mxu0 0.0
    %1597 = vmatpush1.msra.mxu0 %v206
    %1598 = vmatprep.subr.mxu0 0.0
    %1599 = vmatpush1.msra.mxu0 0.0
    %1600 = vmatprep.subr.mxu0 0.0
    %1601 = vmatpush1.msra.mxu0 0.0
    %1602 = vmatprep.subr.mxu0 0.0
    %1603 = vmatpush1.msra.mxu0 0.0
    %1604 = vmatprep.subr.mxu0 0.0
    %1605 = vmatpush1.msra.mxu0 0.0
    %1606 = vmatprep.subr.mxu0 0.0
    %1607 = vmatpush1.msra.mxu0 0.0
    %1608 = vmatprep.subr.mxu0 0.0
    %1609 = vmatpush1.msra.mxu0 0.0
    %1610 = vmatprep.subr.mxu0 0.0
    %1611 = vmatpush1.msra.mxu0 0.0
    %1612 = vmatprep.subr.mxu0 0.0
    %1613 = vmatpush1.msra.mxu0 0.0
    %1614 = vmatprep.subr.mxu0 0.0
    %1615 = vmatpush1.msra.mxu0 0.0
    %1616 = vmatprep.subr.mxu0 0.0
    %1617 = vmatpush1.msra.mxu0 0.0
    %1618 = vmatprep.subr.mxu0 0.0
    %1619 = vmatpush1.msra.mxu0 0.0
    %1620 = vmatprep.subr.mxu0 0.0
    %1621 = vmatpush1.msra.mxu0 0.0
    %1622 = vmatprep.subr.mxu0 0.0
    %1623 = vmatpush1.msra.mxu0 0.0
    %1624 = vmatprep.subr.mxu0 0.0
    %1625 = vmatpush1.msra.mxu0 0.0
    %1626 = vmatprep.subr.mxu0 0.0
    %1627 = vmatpush1.msra.mxu0 0.0
    %1628 = vmatprep.subr.mxu0 0.0
    %1629 = vmatpush1.msra.mxu0 0.0
    %1630 = vmatprep.subr.mxu0 0.0
    %1631 = vmatpush1.msra.mxu0 0.0
    %1632 = vmatprep.subr.mxu0 0.0
    %1633 = vmatpush1.msra.mxu0 0.0
    %1634 = vmatprep.subr.mxu0 0.0
    %1635 = vmatpush1.msra.mxu0 0.0
    %1636 = vmatprep.subr.mxu0 0.0
    %1637 = vmatpush1.msra.mxu0 0.0
    %1638 = vmatprep.subr.mxu0 0.0
    %1639 = vmatpush1.msra.mxu0 0.0
    %1640 = vmatprep.subr.mxu0 0.0
    %1641 = vmatpush1.msra.mxu0 0.0
    %1642 = vmatprep.subr.mxu0 0.0
    %1643 = vmatpush1.msra.mxu0 0.0
    %1644 = vmatprep.subr.mxu0 0.0
    %1645 = vmatpush1.msra.mxu0 0.0
    %1646 = vmatprep.mubr.f32.mxu0 0.0
    %1647 = vmatmul.mubr.f32.gmra.mrb[0].mxu0 %v1580
    %v1648 = vpop.f32.mrb[0].mxu0
    %v1649 = vadd.f32 %v317, %v1648
    %v1650 = vpop.f32.mrb[0].mxu0
    %1651 = vdwg.mxu0
    %v1652 = vxor.u32 %v1649, 2147483648
    %v1653 = vmul.f32 %v1652, 1.442695
    %v1654 = vpow.pop %v1653
    %v1655 = vadd.f32 %v1654, 1.0
    %v1656 = vrcp.pop %v1655
    %v1657 = vmul.f32 1.0, %v1656
    %v1658 = vtanh.pop %v1649
    %v1659 = vmul.f32 %v1657, %v1459
    %1661 = vrot.lane.b32.xlu0 %v1658, 64
    %v1662 = vpop.permute.xlu0 %1661
    %v1664 = vmul.f32 %v1657, %v1662
    %1666 = vrot.lane.b32.xlu0 %v1664, 32
    %v1667 = vpop.permute.xlu0 %1666
    %v1669 = vadd.f32 %v1659, %v1667
    %v1670 = vtanh.pop %v1669
    %1672 = vrot.lane.b32.xlu0 %v1670, 64
    %v1673 = vpop.permute.xlu0 %1672
    %v1675 = vmul.f32 %v1657, %v1673
    %1677 = vrot.lane.b32.xlu0 %v1675, 32
    %v1678 = vpop.permute.xlu0 %1677
    %s1680 = scalar_lea.vmem %s10, 48
    %1681 = vst.msk [vmem:[%s1680] sm:$0xff] %vm209, %v1678
    %s1682 = scalar_lea.vmem [#allocation2], 56
    %v1683 = vld [vmem:[%s1682] sm:$0xff]
    %v1684 = vsel %vm209, %v1573, 0
    %1686 = vmatprep.subr.mxu0 0.0
    %1687 = vmatpush1.msra.mxu0 %v195
    %1688 = vmatprep.subr.mxu0 0.0
    %1689 = vmatpush1.msra.mxu0 %v196
    %1690 = vmatprep.subr.mxu0 0.0
    %1691 = vmatpush1.msra.mxu0 %v197
    %1692 = vmatprep.subr.mxu0 0.0
    %1693 = vmatpush1.msra.mxu0 %v198
    %1694 = vmatprep.subr.mxu0 0.0
    %1695 = vmatpush1.msra.mxu0 0.0
    %1696 = vmatprep.subr.mxu0 0.0
    %1697 = vmatpush1.msra.mxu0 0.0
    %1698 = vmatprep.subr.mxu0 0.0
    %1699 = vmatpush1.msra.mxu0 0.0
    %1700 = vmatprep.subr.mxu0 0.0
    %1701 = vmatpush1.msra.mxu0 0.0
    %1702 = vmatprep.subr.mxu0 0.0
    %1703 = vmatpush1.msra.mxu0 0.0
    %1704 = vmatprep.subr.mxu0 0.0
    %1705 = vmatpush1.msra.mxu0 0.0
    %1706 = vmatprep.subr.mxu0 0.0
    %1707 = vmatpush1.msra.mxu0 0.0
    %1708 = vmatprep.subr.mxu0 0.0
    %1709 = vmatpush1.msra.mxu0 0.0
    %1710 = vmatprep.subr.mxu0 0.0
    %1711 = vmatpush1.msra.mxu0 0.0
    %1712 = vmatprep.subr.mxu0 0.0
    %1713 = vmatpush1.msra.mxu0 0.0
    %1714 = vmatprep.subr.mxu0 0.0
    %1715 = vmatpush1.msra.mxu0 0.0
    %1716 = vmatprep.subr.mxu0 0.0
    %1717 = vmatpush1.msra.mxu0 0.0
    %1718 = vmatprep.subr.mxu0 0.0
    %1719 = vmatpush1.msra.mxu0 0.0
    %1720 = vmatprep.subr.mxu0 0.0
    %1721 = vmatpush1.msra.mxu0 0.0
    %1722 = vmatprep.subr.mxu0 0.0
    %1723 = vmatpush1.msra.mxu0 0.0
    %1724 = vmatprep.subr.mxu0 0.0
    %1725 = vmatpush1.msra.mxu0 0.0
    %1726 = vmatprep.subr.mxu0 0.0
    %1727 = vmatpush1.msra.mxu0 0.0
    %1728 = vmatprep.subr.mxu0 0.0
    %1729 = vmatpush1.msra.mxu0 0.0
    %1730 = vmatprep.subr.mxu0 0.0
    %1731 = vmatpush1.msra.mxu0 0.0
    %1732 = vmatprep.subr.mxu0 0.0
    %1733 = vmatpush1.msra.mxu0 0.0
    %1734 = vmatprep.subr.mxu0 0.0
    %1735 = vmatpush1.msra.mxu0 0.0
    %1736 = vmatprep.subr.mxu0 0.0
    %1737 = vmatpush1.msra.mxu0 0.0
    %1738 = vmatprep.subr.mxu0 0.0
    %1739 = vmatpush1.msra.mxu0 0.0
    %1740 = vmatprep.subr.mxu0 0.0
    %1741 = vmatpush1.msra.mxu0 0.0
    %1742 = vmatprep.subr.mxu0 0.0
    %1743 = vmatpush1.msra.mxu0 0.0
    %1744 = vmatprep.subr.mxu0 0.0
    %1745 = vmatpush1.msra.mxu0 0.0
    %1746 = vmatprep.subr.mxu0 0.0
    %1747 = vmatpush1.msra.mxu0 0.0
    %1748 = vmatprep.subr.mxu0 0.0
    %1749 = vmatpush1.msra.mxu0 0.0
    %1750 = vmatprep.mubr.f32.mxu0 0.0
    %1751 = vmatmul.mubr.f32.gmra.mrb[0].mxu0 %v1684
    %v1752 = vpop.f32.mrb[0].mxu0
    %v1753 = vadd.f32 0.0, %v1752
    %v1754 = vpop.f32.mrb[0].mxu0
    %1755 = vdwg.mxu0
    %v1756 = vadd.f32 %v1683, %v1753
    %v1757 = vxor.u32 %v1756, 2147483648
    %v1758 = vmul.f32 %v1757, 1.442695
    %v1759 = vpow.pop %v1758
    %v1760 = vadd.f32 %v1759, 1.0
    %v1761 = vrcp.pop %v1760
    %v1762 = vmul.f32 1.0, %v1761
    %v1763 = vtanh.pop %v1756
    %v1764 = vmul.f32 %v1762, %v1564
    %1766 = vrot.lane.b32.xlu0 %v1763, 64
    %v1767 = vpop.permute.xlu0 %1766
    %v1769 = vmul.f32 %v1762, %v1767
    %1771 = vrot.lane.b32.xlu0 %v1769, 32
    %v1772 = vpop.permute.xlu0 %1771
    %v1774 = vadd.f32 %v1764, %v1772
    %v1775 = vtanh.pop %v1774
    %1777 = vrot.lane.b32.xlu0 %v1775, 64
    %v1778 = vpop.permute.xlu0 %1777
    %v1780 = vmul.f32 %v1762, %v1778
    %1782 = vrot.lane.b32.xlu0 %v1780, 32
    %v1783 = vpop.permute.xlu0 %1782
    %1785 = vrot.lane.b32.xlu0 %v1675, 64
    %v1786 = vpop.permute.xlu0 %1785
    %v1788 = vsel %vm209, %v1783, %v1786
    %v1790 = vsel %vm319, %v1788, 0
    %1792 = vmatprep.subr.mxu0 0.0
    %1793 = vmatpush1.msra.mxu0 %v199
    %1794 = vmatprep.subr.mxu0 0.0
    %1795 = vmatpush1.msra.mxu0 %v200
    %1796 = vmatprep.subr.mxu0 0.0
    %1797 = vmatpush1.msra.mxu0 %v201
    %1798 = vmatprep.subr.mxu0 0.0
    %1799 = vmatpush1.msra.mxu0 %v202
    %1800 = vmatprep.subr.mxu0 0.0
    %1801 = vmatpush1.msra.mxu0 %v203
    %1802 = vmatprep.subr.mxu0 0.0
    %1803 = vmatpush1.msra.mxu0 %v204
    %1804 = vmatprep.subr.mxu0 0.0
    %1805 = vmatpush1.msra.mxu0 %v205
    %1806 = vmatprep.subr.mxu0 0.0
    %1807 = vmatpush1.msra.mxu0 %v206
    %1808 = vmatprep.subr.mxu0 0.0
    %1809 = vmatpush1.msra.mxu0 0.0
    %1810 = vmatprep.subr.mxu0 0.0
    %1811 = vmatpush1.msra.mxu0 0.0
    %1812 = vmatprep.subr.mxu0 0.0
    %1813 = vmatpush1.msra.mxu0 0.0
    %1814 = vmatprep.subr.mxu0 0.0
    %1815 = vmatpush1.msra.mxu0 0.0
    %1816 = vmatprep.subr.mxu0 0.0
    %1817 = vmatpush1.msra.mxu0 0.0
    %1818 = vmatprep.subr.mxu0 0.0
    %1819 = vmatpush1.msra.mxu0 0.0
    %1820 = vmatprep.subr.mxu0 0.0
    %1821 = vmatpush1.msra.mxu0 0.0
    %1822 = vmatprep.subr.mxu0 0.0
    %1823 = vmatpush1.msra.mxu0 0.0
    %1824 = vmatprep.subr.mxu0 0.0
    %1825 = vmatpush1.msra.mxu0 0.0
    %1826 = vmatprep.subr.mxu0 0.0
    %1827 = vmatpush1.msra.mxu0 0.0
    %1828 = vmatprep.subr.mxu0 0.0
    %1829 = vmatpush1.msra.mxu0 0.0
    %1830 = vmatprep.subr.mxu0 0.0
    %1831 = vmatpush1.msra.mxu0 0.0
    %1832 = vmatprep.subr.mxu0 0.0
    %1833 = vmatpush1.msra.mxu0 0.0
    %1834 = vmatprep.subr.mxu0 0.0
    %1835 = vmatpush1.msra.mxu0 0.0
    %1836 = vmatprep.subr.mxu0 0.0
    %1837 = vmatpush1.msra.mxu0 0.0
    %1838 = vmatprep.subr.mxu0 0.0
    %1839 = vmatpush1.msra.mxu0 0.0
    %1840 = vmatprep.subr.mxu0 0.0
    %1841 = vmatpush1.msra.mxu0 0.0
    %1842 = vmatprep.subr.mxu0 0.0
    %1843 = vmatpush1.msra.mxu0 0.0
    %1844 = vmatprep.subr.mxu0 0.0
    %1845 = vmatpush1.msra.mxu0 0.0
    %1846 = vmatprep.subr.mxu0 0.0
    %1847 = vmatpush1.msra.mxu0 0.0
    %1848 = vmatprep.subr.mxu0 0.0
    %1849 = vmatpush1.msra.mxu0 0.0
    %1850 = vmatprep.subr.mxu0 0.0
    %1851 = vmatpush1.msra.mxu0 0.0
    %1852 = vmatprep.subr.mxu0 0.0
    %1853 = vmatpush1.msra.mxu0 0.0
    %1854 = vmatprep.subr.mxu0 0.0
    %1855 = vmatpush1.msra.mxu0 0.0
    %1856 = vmatprep.mubr.f32.mxu0 0.0
    %1857 = vmatmul.mubr.f32.gmra.mrb[0].mxu0 %v1790
    %v1858 = vpop.f32.mrb[0].mxu0
    %v1859 = vadd.f32 %v317, %v1858
    %v1860 = vpop.f32.mrb[0].mxu0
    %1861 = vdwg.mxu0
    %v1862 = vxor.u32 %v1859, 2147483648
    %v1863 = vmul.f32 %v1862, 1.442695
    %v1864 = vpow.pop %v1863
    %v1865 = vadd.f32 %v1864, 1.0
    %v1866 = vrcp.pop %v1865
    %v1867 = vmul.f32 1.0, %v1866
    %v1868 = vtanh.pop %v1859
    %v1869 = vmul.f32 %v1867, %v1669
    %1871 = vrot.lane.b32.xlu0 %v1868, 64
    %v1872 = vpop.permute.xlu0 %1871
    %v1874 = vmul.f32 %v1867, %v1872
    %1876 = vrot.lane.b32.xlu0 %v1874, 32
    %v1877 = vpop.permute.xlu0 %1876
    %v1879 = vadd.f32 %v1869, %v1877
    %v1880 = vtanh.pop %v1879
    %1882 = vrot.lane.b32.xlu0 %v1880, 64
    %v1883 = vpop.permute.xlu0 %1882
    %v1885 = vmul.f32 %v1867, %v1883
    %1887 = vrot.lane.b32.xlu0 %v1885, 32
    %v1888 = vpop.permute.xlu0 %1887
    %s1890 = scalar_lea.vmem %s10, 56
    %1891 = vst.msk [vmem:[%s1890] sm:$0xff] %vm209, %v1888
    %v1892 = vld [vmem:[%s6] sm:$0xff]
    %v1893 = vld [vmem:[%s6 + $0x8] sm:$0xff]
    %v1894 = vld [vmem:[%s6 + $0x10] sm:$0xff]
    %v1895 = vld [vmem:[%s6 + $0x18] sm:$0xff]
    %v1896 = vld [vmem:[%s7] sm:$0x1]
    %v1898 = vlaneseq
    %v1899 = vshrl.u32 %v1898, 7
    %v1900 = vsub.s32 0, %v1899
    %v1901 = vrot.slane %v1896, %v1900
    %v1903 = vsel %vm209, %v1783, 0
    %v1905 = vsel %vm209, %v1888, 0
    %1907 = vmatprep.subr.mxu0 0.0
    %1908 = vmatpush1.msra.mxu0 %v1892
    %1909 = vmatprep.subr.mxu0 0.0
    %1910 = vmatpush1.msra.mxu0 %v1893
    %1911 = vmatprep.subr.mxu0 0.0
    %1912 = vmatpush1.msra.mxu0 %v1894
    %1913 = vmatprep.subr.mxu0 0.0
    %1914 = vmatpush1.msra.mxu0 %v1895
    %1915 = vmatprep.subr.mxu0 0.0
    %1916 = vmatpush1.msra.mxu0 0.0
    %1917 = vmatprep.subr.mxu0 0.0
    %1918 = vmatpush1.msra.mxu0 0.0
    %1919 = vmatprep.subr.mxu0 0.0
    %1920 = vmatpush1.msra.mxu0 0.0
    %1921 = vmatprep.subr.mxu0 0.0
    %1922 = vmatpush1.msra.mxu0 0.0
    %1923 = vmatprep.subr.mxu0 0.0
    %1924 = vmatpush1.msra.mxu0 0.0
    %1925 = vmatprep.subr.mxu0 0.0
    %1926 = vmatpush1.msra.mxu0 0.0
    %1927 = vmatprep.subr.mxu0 0.0
    %1928 = vmatpush1.msra.mxu0 0.0
    %1929 = vmatprep.subr.mxu0 0.0
    %1930 = vmatpush1.msra.mxu0 0.0
    %1931 = vmatprep.subr.mxu0 0.0
    %1932 = vmatpush1.msra.mxu0 0.0
    %1933 = vmatprep.subr.mxu0 0.0
    %1934 = vmatpush1.msra.mxu0 0.0
    %1935 = vmatprep.subr.mxu0 0.0
    %1936 = vmatpush1.msra.mxu0 0.0
    %1937 = vmatprep.subr.mxu0 0.0
    %1938 = vmatpush1.msra.mxu0 0.0
    %1939 = vmatprep.subr.mxu0 0.0
    %1940 = vmatpush1.msra.mxu0 0.0
    %1941 = vmatprep.subr.mxu0 0.0
    %1942 = vmatpush1.msra.mxu0 0.0
    %1943 = vmatprep.subr.mxu0 0.0
    %1944 = vmatpush1.msra.mxu0 0.0
    %1945 = vmatprep.subr.mxu0 0.0
    %1946 = vmatpush1.msra.mxu0 0.0
    %1947 = vmatprep.subr.mxu0 0.0
    %1948 = vmatpush1.msra.mxu0 0.0
    %1949 = vmatprep.subr.mxu0 0.0
    %1950 = vmatpush1.msra.mxu0 0.0
    %1951 = vmatprep.subr.mxu0 0.0
    %1952 = vmatpush1.msra.mxu0 0.0
    %1953 = vmatprep.subr.mxu0 0.0
    %1954 = vmatpush1.msra.mxu0 0.0
    %1955 = vmatprep.subr.mxu0 0.0
    %1956 = vmatpush1.msra.mxu0 0.0
    %1957 = vmatprep.subr.mxu0 0.0
    %1958 = vmatpush1.msra.mxu0 0.0
    %1959 = vmatprep.subr.mxu0 0.0
    %1960 = vmatpush1.msra.mxu0 0.0
    %1961 = vmatprep.subr.mxu0 0.0
    %1962 = vmatpush1.msra.mxu0 0.0
    %1963 = vmatprep.subr.mxu0 0.0
    %1964 = vmatpush1.msra.mxu0 0.0
    %1965 = vmatprep.subr.mxu0 0.0
    %1966 = vmatpush1.msra.mxu0 0.0
    %1967 = vmatprep.subr.mxu0 0.0
    %1968 = vmatpush1.msra.mxu0 0.0
    %1969 = vmatprep.subr.mxu0 0.0
    %1970 = vmatpush1.msra.mxu0 0.0
    %1971 = vmatprep.mubr.f32.mxu0 0.0
    %1972 = vmatmul.mubr.f32.gmra.mrb[0].mxu0 %v1903
    %v1973 = vpop.f32.mrb[0].mxu0
    %v1974 = vadd.f32 %v1901, %v1973
    %v1975 = vpop.f32.mrb[0].mxu0
    %1976 = vmatprep.mubr.f32.mxu0 0.0
    %1977 = vmatmul.mubr.f32.gmra.mrb[0].mxu0 %v1905
    %v1978 = vpop.f32.mrb[0].mxu0
    %v1979 = vadd.f32 %v1901, %v1978
    %v1980 = vpop.f32.mrb[0].mxu0
    %1981 = vdwg.mxu0
    %1982 = vst.msk [vmem:[#allocation3] sm:$0xff] %vm57, %v1974
    %1983 = vst.msk [vmem:[#allocation3 + $0x8] sm:$0xff] %vm57, %v1979
    %v1984 = vld [vmem:[%s8] sm:$0xff]
    %v1985 = vld [vmem:[%s8 + $0x8] sm:$0xff]
    %v1986 = vld [vmem:[%s8 + $0x10] sm:$0xff]
    %v1987 = vld [vmem:[%s8 + $0x18] sm:$0xff]
    %v1988 = vld [vmem:[%s9] sm:$0x1]
    %v1990 = vlaneseq
    %v1991 = vshrl.u32 %v1990, 7
    %v1992 = vsub.s32 0, %v1991
    %v1993 = vrot.slane %v1988, %v1992
    %1997 = vrot.lane.b32.xlu0 %v1774, 96
    %v1998 = vpop.permute.xlu0 %1997
    %1999 = vrot.lane.b32.xlu0 %v1879, 96
    %v2000 = vpop.permute.xlu0 %1999
    %v2001 = vsel %vm209, %v1998, 0
    %v2003 = vsel %vm209, %v2000, 0
    %2005 = vmatprep.subr.mxu0 0.0
    %2006 = vmatpush1.msra.mxu0 %v1984
    %2007 = vmatprep.subr.mxu0 0.0
    %2008 = vmatpush1.msra.mxu0 %v1985
    %2009 = vmatprep.subr.mxu0 0.0
    %2010 = vmatpush1.msra.mxu0 %v1986
    %2011 = vmatprep.subr.mxu0 0.0
    %2012 = vmatpush1.msra.mxu0 %v1987
    %2013 = vmatprep.subr.mxu0 0.0
    %2014 = vmatpush1.msra.mxu0 0.0
    %2015 = vmatprep.subr.mxu0 0.0
    %2016 = vmatpush1.msra.mxu0 0.0
    %2017 = vmatprep.subr.mxu0 0.0
    %2018 = vmatpush1.msra.mxu0 0.0
    %2019 = vmatprep.subr.mxu0 0.0
    %2020 = vmatpush1.msra.mxu0 0.0
    %2021 = vmatprep.subr.mxu0 0.0
    %2022 = vmatpush1.msra.mxu0 0.0
    %2023 = vmatprep.subr.mxu0 0.0
    %2024 = vmatpush1.msra.mxu0 0.0
    %2025 = vmatprep.subr.mxu0 0.0
    %2026 = vmatpush1.msra.mxu0 0.0
    %2027 = vmatprep.subr.mxu0 0.0
    %2028 = vmatpush1.msra.mxu0 0.0
    %2029 = vmatprep.subr.mxu0 0.0
    %2030 = vmatpush1.msra.mxu0 0.0
    %2031 = vmatprep.subr.mxu0 0.0
    %2032 = vmatpush1.msra.mxu0 0.0
    %2033 = vmatprep.subr.mxu0 0.0
    %2034 = vmatpush1.msra.mxu0 0.0
    %2035 = vmatprep.subr.mxu0 0.0
    %2036 = vmatpush1.msra.mxu0 0.0
    %2037 = vmatprep.subr.mxu0 0.0
    %2038 = vmatpush1.msra.mxu0 0.0
    %2039 = vmatprep.subr.mxu0 0.0
    %2040 = vmatpush1.msra.mxu0 0.0
    %2041 = vmatprep.subr.mxu0 0.0
    %2042 = vmatpush1.msra.mxu0 0.0
    %2043 = vmatprep.subr.mxu0 0.0
    %2044 = vmatpush1.msra.mxu0 0.0
    %2045 = vmatprep.subr.mxu0 0.0
    %2046 = vmatpush1.msra.mxu0 0.0
    %2047 = vmatprep.subr.mxu0 0.0
    %2048 = vmatpush1.msra.mxu0 0.0
    %2049 = vmatprep.subr.mxu0 0.0
    %2050 = vmatpush1.msra.mxu0 0.0
    %2051 = vmatprep.subr.mxu0 0.0
    %2052 = vmatpush1.msra.mxu0 0.0
    %2053 = vmatprep.subr.mxu0 0.0
    %2054 = vmatpush1.msra.mxu0 0.0
    %2055 = vmatprep.subr.mxu0 0.0
    %2056 = vmatpush1.msra.mxu0 0.0
    %2057 = vmatprep.subr.mxu0 0.0
    %2058 = vmatpush1.msra.mxu0 0.0
    %2059 = vmatprep.subr.mxu0 0.0
    %2060 = vmatpush1.msra.mxu0 0.0
    %2061 = vmatprep.subr.mxu0 0.0
    %2062 = vmatpush1.msra.mxu0 0.0
    %2063 = vmatprep.subr.mxu0 0.0
    %2064 = vmatpush1.msra.mxu0 0.0
    %2065 = vmatprep.subr.mxu0 0.0
    %2066 = vmatpush1.msra.mxu0 0.0
    %2067 = vmatprep.subr.mxu0 0.0
    %2068 = vmatpush1.msra.mxu0 0.0
    %2069 = vmatprep.mubr.f32.mxu0 0.0
    %2070 = vmatmul.mubr.f32.gmra.mrb[0].mxu0 %v2001
    %v2071 = vpop.f32.mrb[0].mxu0
    %v2072 = vadd.f32 %v1993, %v2071
    %v2073 = vpop.f32.mrb[0].mxu0
    %2074 = vmatprep.mubr.f32.mxu0 0.0
    %2075 = vmatmul.mubr.f32.gmra.mrb[0].mxu0 %v2003
    %v2076 = vpop.f32.mrb[0].mxu0
    %v2077 = vadd.f32 %v1993, %v2076
    %v2078 = vpop.f32.mrb[0].mxu0
    %2079 = vdwg.mxu0
    %2080 = vst.msk [vmem:[#allocation5] sm:$0xff] %vm57, %v2072
    %2081 = vst.msk [vmem:[#allocation5 + $0x8] sm:$0xff] %vm57, %v2077
    // Predicated region
    $region42: #{encoder_rnn_attention_forward.1} parent=1 // pred_check
      _
    $region43: #{encoder_rnn_attention_forward.1} parent=1 // pred_check_branch
      %2083 = sbr.rel (0) target = $region45
    $region44: #{encoder_rnn_attention_forward.1} parent=1 // pred_region
      _
    $region45: #{encoder_rnn_attention_forward.1} parent=1 // pred_fallthru
      _
    // Predicated region
    $region46: #{encoder_rnn_attention_forward.1} parent=1 // pred_check
      _
    $region47: #{encoder_rnn_attention_forward.1} parent=1 // pred_check_branch
      %2085 = sbr.rel (0) target = $region49
    $region48: #{encoder_rnn_attention_forward.1} parent=1 // pred_region
      %s2087 = ssub.s32 256, 256
      %2088 = vsyncadd [#allocation4], %s2087
      %s2089 = sshll.u32 [#allocation3], 4
      %s2090 = int_to_ptr.vmem [resolvable:$true] %s2089
      %2095 = dma.vmem_to_hbm [thread:$0]  %s2090, 256, %s11, [#allocation4], 128, 128, 8
    $region49: #{encoder_rnn_attention_forward.1} parent=1 // pred_fallthru
      _
    // Predicated region
    $region50: #{encoder_rnn_attention_forward.1} parent=1 // pred_check
      _
    $region51: #{encoder_rnn_attention_forward.1} parent=1 // pred_check_branch
      %2097 = sbr.rel (0) target = $region53
    $region52: #{encoder_rnn_attention_forward.1} parent=1 // pred_region
      %s2099 = ssub.s32 256, 256
      %2100 = vsyncadd [#allocation6], %s2099
      %s2101 = sshll.u32 [#allocation5], 4
      %s2102 = int_to_ptr.vmem [resolvable:$true] %s2101
      %2107 = dma.vmem_to_hbm [thread:$0]  %s2102, 256, %s12, [#allocation6], 128, 128, 8
    $region53: #{encoder_rnn_attention_forward.1} parent=1 // pred_fallthru
      _
    // Predicated region
    $region54: #{encoder_rnn_attention_forward.1} parent=1 // pred_check
      _
    $region55: #{encoder_rnn_attention_forward.1} parent=1 // pred_check_branch
      %2109 = sbr.rel (0) target = $region57
    $region56: #{encoder_rnn_attention_forward.1} parent=1 // pred_region
      _
    $region57: #{encoder_rnn_attention_forward.1} parent=1 // pred_fallthru
      _
    // Predicated region
    $region58: #{encoder_rnn_attention_forward.1} parent=1 // pred_check
      _
    $region59: #{encoder_rnn_attention_forward.1} parent=1 // pred_check_branch
      %2111 = sbr.rel (0) target = $region61
    $region60: #{encoder_rnn_attention_forward.1} parent=1 // pred_region
      %2112 = dma.done [#allocation4], 256
    $region61: #{encoder_rnn_attention_forward.1} parent=1 // pred_fallthru
      _
    // Predicated region
    $region62: #{encoder_rnn_attention_forward.1} parent=1 // pred_check
      _
    $region63: #{encoder_rnn_attention_forward.1} parent=1 // pred_check_branch
      %2114 = sbr.rel (0) target = $region65
    $region64: #{encoder_rnn_attention_forward.1} parent=1 // pred_region
      %2115 = dma.done [#allocation6], 256
    $region65: #{encoder_rnn_attention_forward.1} parent=1 // pred_fallthru
      _
    %2116 = vsyncpa [#allocation4], 1
    %2117 = vsyncpa [#allocation6], 1

</llo_original>
